<compile_context>
chip_gen: v7x
topology: tpu7x:2x2x1
jax: 0.10.0
libtpu: 0.0.40
codegen_flags: <defaults>
</compile_context>

<pallas_src>
import random
from functools import partial

import jax
import jax.numpy as jnp
from jax.experimental import pallas as pl
from jax.experimental.pallas import tpu as pltpu

_LANE = 128        # lane width (last-dim tiling)
_TILE_GRAN = 16    # batch-tile granularity (bf16 sublane pack = 16 rows)
_MAX_MID = 3       # random.randint(0, 3) upper bound in the original forward
_MAX_TILE_N = 512  # batch tile cap (sweep 512/1024 for very large N)


def _round_up(x, m):
    return (x + m - 1) // m * m


# ---------------------------------------------------------------------------
# Kernel
# ---------------------------------------------------------------------------
def dynamic_net_kernel(n_mid_ref,                      # SMEM scalar prefetch
                       x_ref, w1_ref, b1_ref,          # input tile + linear1
                       w2_ref, b2_ref,                 # shared linear2
                       w3_ref, b3_ref,                 # linear3
                       out_ref,                        # output tile
                       h_ref):                         # f32 VMEM scratch [tile_n, Hp]
    n_mid = n_mid_ref[0]

    # linear1 + clamp(min=0).  MXU operands in bf16, accumulate/bias/ReLU in f32.
    # h_ref is (re)written unconditionally every grid step (scratch persists
    # across grid iterations), so no stale h leaks between batch tiles.
    h_ref[...] = jnp.maximum(
        jnp.dot(x_ref[...].astype(jnp.bfloat16), w1_ref[...],
                preferred_element_type=jnp.float32) + b1_ref[...],
        0.0)

    # Weight-shared middle layer: only the first n_mid iterations execute
    # (pl.when bodies are skipped at runtime -> no wasted MXU work).
    for k in range(_MAX_MID):
        @pl.when(k < n_mid)
        def _():
            h_ref[...] = jnp.maximum(
                jnp.dot(h_ref[...].astype(jnp.bfloat16), w2_ref[...],
                        preferred_element_type=jnp.float32) + b2_ref[...],
                0.0)

    # linear3 (no activation)
    y = jnp.dot(h_ref[...].astype(jnp.bfloat16), w3_ref[...],
                preferred_element_type=jnp.float32) + b3_ref[...]
    out_ref[...] = y.astype(out_ref.dtype)


# ---------------------------------------------------------------------------
# One-time parameter preparation (model-init glue, not per-call)
# ---------------------------------------------------------------------------
def prepare_dynamic_net_params(w1, b1, w2, b2, w3, b3):
    """Transpose PyTorch [out, in] weights to [in, out], zero-pad feature dims
    to lane (128) multiples and cast weights to MXU-native bf16.  Call once at
    model init; the forward path then does no per-call weight glue."""
    D_in, H, D_out = w1.shape[1], w1.shape[0], w3.shape[0]
    Dp, Hp, Dop = (_round_up(d, _LANE) for d in (D_in, H, D_out))

    def pad2(a, rows, cols):
        return jnp.pad(a, ((0, rows - a.shape[0]), (0, cols - a.shape[1])))

    arrays = (
        pad2(w1.T, Dp, Hp).astype(jnp.bfloat16),
        pad2(b1[None, :].astype(jnp.float32), 1, Hp),
        pad2(w2.T, Hp, Hp).astype(jnp.bfloat16),
        pad2(b2[None, :].astype(jnp.float32), 1, Hp),
        pad2(w3.T, Hp, Dop).astype(jnp.bfloat16),
        pad2(b3[None, :].astype(jnp.float32), 1, Dop),
    )
    return {"arrays": jax.device_put(arrays), "d_out": D_out}


# ---------------------------------------------------------------------------
# Forward
# ---------------------------------------------------------------------------
@partial(jax.jit, static_argnames=("d_out", "single_buffer_weights"))
def _dynamic_net_impl(x, w1, b1, w2, b2, w3, b3, n_mid_arr, *, d_out,
                      single_buffer_weights):
    N, D_in = x.shape
    Dp, Hp = w1.shape
    Dop = w3.shape[1]

    # Batch tiling: multiple of 16, capped at _MAX_TILE_N.  If the grid would
    # have a single step but the batch is big enough, split it in two so the
    # "parallel" grid axis can shard across both v7x TensorCores.
    tile_n = min(_round_up(N, _TILE_GRAN), _MAX_TILE_N)
    if _round_up(N, tile_n) // tile_n < 2 and N >= 2 * _TILE_GRAN:
        tile_n = _round_up((N + 1) // 2, _TILE_GRAN)
    Np = _round_up(N, tile_n)

    x_p = jnp.pad(x, ((0, Np - N), (0, Dp - D_in)))

    def const_spec(shape):
        # Whole-array block, constant index_map -> VMEM-resident across grid
        # steps.  Single-buffered when supported (never re-DMAed).
        idx = lambda i, n: (0,) * len(shape)
        if single_buffer_weights:
            return pl.BlockSpec(shape, idx, pipeline_mode=pl.Buffered(1))
        return pl.BlockSpec(shape, idx)

    # Scoped-VMEM budget: resident weights/biases + double-buffered x/out
    # tiles + h scratch, with generous headroom for in-kernel temporaries.
    wbuf = 1 if single_buffer_weights else 2
    resident = wbuf * (2 * (Dp * Hp + Hp * Hp + Hp * Dop) + 4 * (2 * Hp + Dop))
    tiles = 2 * tile_n * (Dp + Dop) * 4 + tile_n * Hp * 4
    vmem_limit = int(min(2 * (resident + tiles) + (16 << 20), 128 << 20))

    y_p = pl.pallas_call(
        dynamic_net_kernel,
        out_shape=jax.ShapeDtypeStruct((Np, Dop), x.dtype),
        grid_spec=pltpu.PrefetchScalarGridSpec(
            num_scalar_prefetch=1,
            grid=(Np // tile_n,),
            in_specs=[
                pl.BlockSpec((tile_n, Dp), lambda i, n: (i, 0)),   # x: batch-tiled
                const_spec((Dp, Hp)), const_spec((1, Hp)),         # linear1
                const_spec((Hp, Hp)), const_spec((1, Hp)),         # linear2 (shared)
                const_spec((Hp, Dop)), const_spec((1, Dop)),       # linear3
            ],
            out_specs=pl.BlockSpec((tile_n, Dop), lambda i, n: (i, 0)),
            scratch_shapes=[pltpu.VMEM((tile_n, Hp), jnp.float32)],
        ),
        compiler_params=pltpu.CompilerParams(
            dimension_semantics=("parallel",),     # shard batch tiles across TCs
            vmem_limit_bytes=vmem_limit),
    )(n_mid_arr, x_p, w1, b1, w2, b2, w3, b3)

    return y_p[:N, :d_out]


_SINGLE_BUFFER_OK = None   # resolved lazily on first forward call


def dynamic_net_forward(x, params, n_mid):
    """x: [N, D_in] f32; params: prepare_dynamic_net_params(...);
    n_mid: python int in [0, 3] (the random repetition count)."""
    global _SINGLE_BUFFER_OK
    assert 0 <= n_mid <= _MAX_MID
    n_mid_arr = jnp.asarray([n_mid], dtype=jnp.int32)
    args = (x, *params["arrays"], n_mid_arr)
    if _SINGLE_BUFFER_OK is None:
        try:
            y = jax.block_until_ready(_dynamic_net_impl(
                *args, d_out=params["d_out"], single_buffer_weights=True))
            _SINGLE_BUFFER_OK = True
            return y
        except Exception:
            # pipeline_mode=pl.Buffered(1) not supported on this jax build:
            # fall back to default double-buffered weight specs (correct,
            # just uses 2x resident-weight VMEM).
            _SINGLE_BUFFER_OK = False
    return _dynamic_net_impl(*args, d_out=params["d_out"],
                             single_buffer_weights=_SINGLE_BUFFER_OK)


# ---------------------------------------------------------------------------
# Reference + self-test
# ---------------------------------------------------------------------------
def _reference(x, w1, b1, w2, b2, w3, b3, n_mid):
    h = jnp.maximum(x @ w1.T + b1, 0.0)
    for _ in range(n_mid):
        h = jnp.maximum(h @ w2.T + b2, 0.0)
    return h @ w3.T + b3


if __name__ == "__main__":
    # Small shapes consistent with the module: N x D_in -> H -> H (x k) -> D_out
    N, D_in, H, D_out = 32, 64, 32, 16
    dtype = jnp.float32

    key = jax.random.PRNGKey(0)
    kx, k1, k2, k3, kb1, kb2, kb3 = jax.random.split(key, 7)
    x = jax.random.normal(kx, (N, D_in), dtype=dtype)

    # Deterministic parameter init (PyTorch-Linear-like uniform +-1/sqrt(fan_in)).
    def init_linear(kw, kb, fan_in, fan_out):
        bound = 1.0 / (fan_in ** 0.5)
        w = jax.random.uniform(kw, (fan_out, fan_in), dtype, -bound, bound)
        b = jax.random.uniform(kb, (fan_out,), dtype, -bound, bound)
        return w, b

    w1, b1 = init_linear(k1, kb1, D_in, H)
    w2, b2 = init_linear(k2, kb2, H, H)
    w3, b3 = init_linear(k3, kb3, H, D_out)

    # One-time weight preparation (transpose + pad + bf16 cast).
    params = prepare_dynamic_net_params(w1, b1, w2, b2, w3, b3)

    # Check every repetition count (0..3) -- all reuse the same compiled
    # kernel (n_mid is scalar-prefetched, so no retrace).  bf16 matmul
    # operands -> loosened tolerance vs. the f32 reference.
    for n_mid in range(_MAX_MID + 1):
        y = jax.block_until_ready(dynamic_net_forward(x, params, n_mid))
        y_ref = _reference(x, w1, b1, w2, b2, w3, b3, n_mid)
        assert y.shape == (N, D_out)
        assert jnp.allclose(y, y_ref, atol=3e-2, rtol=3e-2), f"mismatch at n_mid={n_mid}"

    # Deterministic stand-in for `random.randint(0, 3)` in the original forward.
    n_mid = random.Random(0).randint(0, _MAX_MID)
    y = jax.block_until_ready(dynamic_net_forward(x, params, n_mid))
    assert jnp.allclose(y, _reference(x, w1, b1, w2, b2, w3, b3, n_mid),
                        atol=3e-2, rtol=3e-2)

    print("KERNEL_OK")
</pallas_src>

<mosaic_0001>
module attributes {stable_mosaic.version = 11 : i64} {
  func.func @dynamic_net_kernel(%arg0: i32, %arg1: memref<1xi32, #tpu.memory_space<smem>>, %arg2: memref<16x128xf32, #tpu.memory_space<vmem>>, %arg3: memref<128x128xbf16, #tpu.memory_space<vmem>>, %arg4: memref<1x128xf32, #tpu.memory_space<vmem>>, %arg5: memref<128x128xbf16, #tpu.memory_space<vmem>>, %arg6: memref<1x128xf32, #tpu.memory_space<vmem>>, %arg7: memref<128x128xbf16, #tpu.memory_space<vmem>>, %arg8: memref<1x128xf32, #tpu.memory_space<vmem>>, %arg9: memref<16x128xf32, #tpu.memory_space<vmem>>, %arg10: memref<16x128xf32, #tpu.memory_space<vmem>>) attributes {dimension_semantics = [#tpu.dimension_semantics<parallel>], iteration_bounds = array<i64: 2>, scalar_prefetch = 1 : i64, scratch_operands = 1 : i64, tpu.core_type = #tpu.core_type<tc>, window_params = [{transform_indices = @transform_0, window_bounds = array<i64: 16, 128>}, {pipeline_mode = #tpu.pipeline_mode<synchronous>, transform_indices = @transform_1, window_bounds = array<i64: 128, 128>}, {pipeline_mode = #tpu.pipeline_mode<synchronous>, transform_indices = @transform_2, window_bounds = array<i64: 1, 128>}, {pipeline_mode = #tpu.pipeline_mode<synchronous>, transform_indices = @transform_3, window_bounds = array<i64: 128, 128>}, {pipeline_mode = #tpu.pipeline_mode<synchronous>, transform_indices = @transform_4, window_bounds = array<i64: 1, 128>}, {pipeline_mode = #tpu.pipeline_mode<synchronous>, transform_indices = @transform_5, window_bounds = array<i64: 128, 128>}, {pipeline_mode = #tpu.pipeline_mode<synchronous>, transform_indices = @transform_6, window_bounds = array<i64: 1, 128>}, {transform_indices = @transform_7, window_bounds = array<i64: 16, 128>}]} {
    %c0 = arith.constant 0 : index
    %0 = memref.load %arg1[%c0] : memref<1xi32, #tpu.memory_space<smem>>
    %c0_0 = arith.constant 0 : index
    %c0_1 = arith.constant 0 : index
    %1 = vector.load %arg2[%c0_0, %c0_1] : memref<16x128xf32, #tpu.memory_space<vmem>>, vector<16x128xf32>
    %2 = arith.truncf %1 : vector<16x128xf32> to vector<16x128xbf16>
    %c0_2 = arith.constant 0 : index
    %c0_3 = arith.constant 0 : index
    %3 = vector.load %arg3[%c0_2, %c0_3] : memref<128x128xbf16, #tpu.memory_space<vmem>>, vector<128x128xbf16>
    %cst = arith.constant dense<0.000000e+00> : vector<16x128xf32>
    %4 = tpu.matmul %2, %3, %cst {dimension_numbers = #tpu.dot_dimension_numbers<[1], [0], [0], [1], [0, 0, 1, 1], [], []>} : vector<16x128xbf16>, vector<128x128xbf16>, vector<16x128xf32> -> vector<16x128xf32>
    %c0_4 = arith.constant 0 : index
    %c0_5 = arith.constant 0 : index
    %5 = vector.load %arg4[%c0_4, %c0_5] : memref<1x128xf32, #tpu.memory_space<vmem>>, vector<1x128xf32>
    %6 = vector.broadcast %5 : vector<1x128xf32> to vector<16x128xf32>
    %7 = arith.addf %4, %6 : vector<16x128xf32>
    %cst_6 = arith.constant 0.000000e+00 : f32
    %8 = vector.broadcast %cst_6 : f32 to vector<16x128xf32>
    %9 = arith.maximumf %7, %8 : vector<16x128xf32>
    %c0_7 = arith.constant 0 : index
    %c0_8 = arith.constant 0 : index
    %10 = vector.load %arg10[%c0_7, %c0_8] : memref<16x128xf32, #tpu.memory_space<vmem>>, vector<16x128xf32>
    tpu.vector_store %arg10[%c0_7, %c0_8], %9 {strides = array<i32>} : memref<16x128xf32, #tpu.memory_space<vmem>>, vector<16x128xf32>,
    %c0_i32 = arith.constant 0 : i32
    %11 = arith.cmpi sgt, %0, %c0_i32 : i32
    %12 = arith.extui %11 : i1 to i32
    %c0_i32_9 = arith.constant 0 : i32
    %13 = arith.cmpi ne, %12, %c0_i32_9 : i32
    scf.if %13 {
      %c0_21 = arith.constant 0 : index
      %c0_22 = arith.constant 0 : index
      %28 = vector.load %arg10[%c0_21, %c0_22] : memref<16x128xf32, #tpu.memory_space<vmem>>, vector<16x128xf32>
      %29 = arith.truncf %28 : vector<16x128xf32> to vector<16x128xbf16>
      %c0_23 = arith.constant 0 : index
      %c0_24 = arith.constant 0 : index
      %30 = vector.load %arg5[%c0_23, %c0_24] : memref<128x128xbf16, #tpu.memory_space<vmem>>, vector<128x128xbf16>
      %cst_25 = arith.constant dense<0.000000e+00> : vector<16x128xf32>
      %31 = tpu.matmul %29, %30, %cst_25 {dimension_numbers = #tpu.dot_dimension_numbers<[1], [0], [0], [1], [0, 0, 1, 1], [], []>} : vector<16x128xbf16>, vector<128x128xbf16>, vector<16x128xf32> -> vector<16x128xf32>
      %c0_26 = arith.constant 0 : index
      %c0_27 = arith.constant 0 : index
      %32 = vector.load %arg6[%c0_26, %c0_27] : memref<1x128xf32, #tpu.memory_space<vmem>>, vector<1x128xf32>
      %33 = vector.broadcast %32 : vector<1x128xf32> to vector<16x128xf32>
      %34 = arith.addf %31, %33 : vector<16x128xf32>
      %cst_28 = arith.constant 0.000000e+00 : f32
      %35 = vector.broadcast %cst_28 : f32 to vector<16x128xf32>
      %36 = arith.maximumf %34, %35 : vector<16x128xf32>
      %c0_29 = arith.constant 0 : index
      %c0_30 = arith.constant 0 : index
      %37 = vector.load %arg10[%c0_29, %c0_30] : memref<16x128xf32, #tpu.memory_space<vmem>>, vector<16x128xf32>
      tpu.vector_store %arg10[%c0_29, %c0_30], %36 {strides = array<i32>} : memref<16x128xf32, #tpu.memory_space<vmem>>, vector<16x128xf32>,
    } else {
    }
    %c1_i32 = arith.constant 1 : i32
    %14 = arith.cmpi sgt, %0, %c1_i32 : i32
    %15 = arith.extui %14 : i1 to i32
    %c0_i32_10 = arith.constant 0 : i32
    %16 = arith.cmpi ne, %15, %c0_i32_10 : i32
    scf.if %16 {
      %c0_21 = arith.constant 0 : index
      %c0_22 = arith.constant 0 : index
      %28 = vector.load %arg10[%c0_21, %c0_22] : memref<16x128xf32, #tpu.memory_space<vmem>>, vector<16x128xf32>
      %29 = arith.truncf %28 : vector<16x128xf32> to vector<16x128xbf16>
      %c0_23 = arith.constant 0 : index
      %c0_24 = arith.constant 0 : index
      %30 = vector.load %arg5[%c0_23, %c0_24] : memref<128x128xbf16, #tpu.memory_space<vmem>>, vector<128x128xbf16>
      %cst_25 = arith.constant dense<0.000000e+00> : vector<16x128xf32>
      %31 = tpu.matmul %29, %30, %cst_25 {dimension_numbers = #tpu.dot_dimension_numbers<[1], [0], [0], [1], [0, 0, 1, 1], [], []>} : vector<16x128xbf16>, vector<128x128xbf16>, vector<16x128xf32> -> vector<16x128xf32>
      %c0_26 = arith.constant 0 : index
      %c0_27 = arith.constant 0 : index
      %32 = vector.load %arg6[%c0_26, %c0_27] : memref<1x128xf32, #tpu.memory_space<vmem>>, vector<1x128xf32>
      %33 = vector.broadcast %32 : vector<1x128xf32> to vector<16x128xf32>
      %34 = arith.addf %31, %33 : vector<16x128xf32>
      %cst_28 = arith.constant 0.000000e+00 : f32
      %35 = vector.broadcast %cst_28 : f32 to vector<16x128xf32>
      %36 = arith.maximumf %34, %35 : vector<16x128xf32>
      %c0_29 = arith.constant 0 : index
      %c0_30 = arith.constant 0 : index
      %37 = vector.load %arg10[%c0_29, %c0_30] : memref<16x128xf32, #tpu.memory_space<vmem>>, vector<16x128xf32>
      tpu.vector_store %arg10[%c0_29, %c0_30], %36 {strides = array<i32>} : memref<16x128xf32, #tpu.memory_space<vmem>>, vector<16x128xf32>,
    } else {
    }
    %c2_i32 = arith.constant 2 : i32
    %17 = arith.cmpi sgt, %0, %c2_i32 : i32
    %18 = arith.extui %17 : i1 to i32
    %c0_i32_11 = arith.constant 0 : i32
    %19 = arith.cmpi ne, %18, %c0_i32_11 : i32
    scf.if %19 {
      %c0_21 = arith.constant 0 : index
      %c0_22 = arith.constant 0 : index
      %28 = vector.load %arg10[%c0_21, %c0_22] : memref<16x128xf32, #tpu.memory_space<vmem>>, vector<16x128xf32>
      %29 = arith.truncf %28 : vector<16x128xf32> to vector<16x128xbf16>
      %c0_23 = arith.constant 0 : index
      %c0_24 = arith.constant 0 : index
      %30 = vector.load %arg5[%c0_23, %c0_24] : memref<128x128xbf16, #tpu.memory_space<vmem>>, vector<128x128xbf16>
      %cst_25 = arith.constant dense<0.000000e+00> : vector<16x128xf32>
      %31 = tpu.matmul %29, %30, %cst_25 {dimension_numbers = #tpu.dot_dimension_numbers<[1], [0], [0], [1], [0, 0, 1, 1], [], []>} : vector<16x128xbf16>, vector<128x128xbf16>, vector<16x128xf32> -> vector<16x128xf32>
      %c0_26 = arith.constant 0 : index
      %c0_27 = arith.constant 0 : index
      %32 = vector.load %arg6[%c0_26, %c0_27] : memref<1x128xf32, #tpu.memory_space<vmem>>, vector<1x128xf32>
      %33 = vector.broadcast %32 : vector<1x128xf32> to vector<16x128xf32>
      %34 = arith.addf %31, %33 : vector<16x128xf32>
      %cst_28 = arith.constant 0.000000e+00 : f32
      %35 = vector.broadcast %cst_28 : f32 to vector<16x128xf32>
      %36 = arith.maximumf %34, %35 : vector<16x128xf32>
      %c0_29 = arith.constant 0 : index
      %c0_30 = arith.constant 0 : index
      %37 = vector.load %arg10[%c0_29, %c0_30] : memref<16x128xf32, #tpu.memory_space<vmem>>, vector<16x128xf32>
      tpu.vector_store %arg10[%c0_29, %c0_30], %36 {strides = array<i32>} : memref<16x128xf32, #tpu.memory_space<vmem>>, vector<16x128xf32>,
    } else {
    }
    %c0_12 = arith.constant 0 : index
    %c0_13 = arith.constant 0 : index
    %20 = vector.load %arg10[%c0_12, %c0_13] : memref<16x128xf32, #tpu.memory_space<vmem>>, vector<16x128xf32>
    %21 = arith.truncf %20 : vector<16x128xf32> to vector<16x128xbf16>
    %c0_14 = arith.constant 0 : index
    %c0_15 = arith.constant 0 : index
    %22 = vector.load %arg7[%c0_14, %c0_15] : memref<128x128xbf16, #tpu.memory_space<vmem>>, vector<128x128xbf16>
    %cst_16 = arith.constant dense<0.000000e+00> : vector<16x128xf32>
    %23 = tpu.matmul %21, %22, %cst_16 {dimension_numbers = #tpu.dot_dimension_numbers<[1], [0], [0], [1], [0, 0, 1, 1], [], []>} : vector<16x128xbf16>, vector<128x128xbf16>, vector<16x128xf32> -> vector<16x128xf32>
    %c0_17 = arith.constant 0 : index
    %c0_18 = arith.constant 0 : index
    %24 = vector.load %arg8[%c0_17, %c0_18] : memref<1x128xf32, #tpu.memory_space<vmem>>, vector<1x128xf32>
    %25 = vector.broadcast %24 : vector<1x128xf32> to vector<16x128xf32>
    %26 = arith.addf %23, %25 : vector<16x128xf32>
    %c0_19 = arith.constant 0 : index
    %c0_20 = arith.constant 0 : index
    %27 = vector.load %arg9[%c0_19, %c0_20] : memref<16x128xf32, #tpu.memory_space<vmem>>, vector<16x128xf32>
    tpu.vector_store %arg9[%c0_19, %c0_20], %26 {strides = array<i32>} : memref<16x128xf32, #tpu.memory_space<vmem>>, vector<16x128xf32>,
    return
  }
  func.func @transform_0(%arg0: i32, %arg1: memref<1xi32, #tpu.memory_space<smem>>) -> (i32, i32) {
    %c0_i32 = arith.constant 0 : i32
    %c0_i32_0 = arith.constant 0 : i32
    return %arg0, %c0_i32 : i32, i32
  }
  func.func @transform_1(%arg0: i32, %arg1: memref<1xi32, #tpu.memory_space<smem>>) -> (i32, i32) {
    %c0_i32 = arith.constant 0 : i32
    %c0_i32_0 = arith.constant 0 : i32
    %c0_i32_1 = arith.constant 0 : i32
    return %c0_i32, %c0_i32_0 : i32, i32
  }
  func.func @transform_2(%arg0: i32, %arg1: memref<1xi32, #tpu.memory_space<smem>>) -> (i32, i32) {
    %c0_i32 = arith.constant 0 : i32
    %c0_i32_0 = arith.constant 0 : i32
    %c0_i32_1 = arith.constant 0 : i32
    return %c0_i32, %c0_i32_0 : i32, i32
  }
  func.func @transform_3(%arg0: i32, %arg1: memref<1xi32, #tpu.memory_space<smem>>) -> (i32, i32) {
    %c0_i32 = arith.constant 0 : i32
    %c0_i32_0 = arith.constant 0 : i32
    %c0_i32_1 = arith.constant 0 : i32
    return %c0_i32, %c0_i32_0 : i32, i32
  }
  func.func @transform_4(%arg0: i32, %arg1: memref<1xi32, #tpu.memory_space<smem>>) -> (i32, i32) {
    %c0_i32 = arith.constant 0 : i32
    %c0_i32_0 = arith.constant 0 : i32
    %c0_i32_1 = arith.constant 0 : i32
    return %c0_i32, %c0_i32_0 : i32, i32
  }
  func.func @transform_5(%arg0: i32, %arg1: memref<1xi32, #tpu.memory_space<smem>>) -> (i32, i32) {
    %c0_i32 = arith.constant 0 : i32
    %c0_i32_0 = arith.constant 0 : i32
    %c0_i32_1 = arith.constant 0 : i32
    return %c0_i32, %c0_i32_0 : i32, i32
  }
  func.func @transform_6(%arg0: i32, %arg1: memref<1xi32, #tpu.memory_space<smem>>) -> (i32, i32) {
    %c0_i32 = arith.constant 0 : i32
    %c0_i32_0 = arith.constant 0 : i32
    %c0_i32_1 = arith.constant 0 : i32
    return %c0_i32, %c0_i32_0 : i32, i32
  }
  func.func @transform_7(%arg0: i32, %arg1: memref<1xi32, #tpu.memory_space<smem>>) -> (i32, i32) {
    %c0_i32 = arith.constant 0 : i32
    %c0_i32_0 = arith.constant 0 : i32
    return %arg0, %c0_i32 : i32, i32
  }
}

module attributes {stable_mosaic.version = 11 : i64} {
  func.func @dynamic_net_kernel(%arg0: i32, %arg1: memref<1xi32, #tpu.memory_space<smem>>, %arg2: memref<16x128xf32, #tpu.memory_space<vmem>>, %arg3: memref<128x128xbf16, #tpu.memory_space<vmem>>, %arg4: memref<1x128xf32, #tpu.memory_space<vmem>>, %arg5: memref<128x128xbf16, #tpu.memory_space<vmem>>, %arg6: memref<1x128xf32, #tpu.memory_space<vmem>>, %arg7: memref<128x128xbf16, #tpu.memory_space<vmem>>, %arg8: memref<1x128xf32, #tpu.memory_space<vmem>>, %arg9: memref<16x128xf32, #tpu.memory_space<vmem>>, %arg10: memref<16x128xf32, #tpu.memory_space<vmem>>) attributes {dimension_semantics = [#tpu.dimension_semantics<parallel>], iteration_bounds = array<i64: 2>, scalar_prefetch = 1 : i64, scratch_operands = 1 : i64, tpu.core_type = #tpu.core_type<tc>, window_params = [{transform_indices = @transform_0, window_bounds = array<i64: 16, 128>}, {pipeline_mode = #tpu.pipeline_mode<synchronous>, transform_indices = @transform_1, window_bounds = array<i64: 128, 128>}, {pipeline_mode = #tpu.pipeline_mode<synchronous>, transform_indices = @transform_2, window_bounds = array<i64: 1, 128>}, {pipeline_mode = #tpu.pipeline_mode<synchronous>, transform_indices = @transform_3, window_bounds = array<i64: 128, 128>}, {pipeline_mode = #tpu.pipeline_mode<synchronous>, transform_indices = @transform_4, window_bounds = array<i64: 1, 128>}, {pipeline_mode = #tpu.pipeline_mode<synchronous>, transform_indices = @transform_5, window_bounds = array<i64: 128, 128>}, {pipeline_mode = #tpu.pipeline_mode<synchronous>, transform_indices = @transform_6, window_bounds = array<i64: 1, 128>}, {transform_indices = @transform_7, window_bounds = array<i64: 16, 128>}]} {
    %c0 = arith.constant 0 : index
    %0 = memref.load %arg1[%c0] : memref<1xi32, #tpu.memory_space<smem>>
    %c0_0 = arith.constant 0 : index
    %c0_1 = arith.constant 0 : index
    %1 = vector.load %arg2[%c0_0, %c0_1] : memref<16x128xf32, #tpu.memory_space<vmem>>, vector<16x128xf32>
    %2 = arith.truncf %1 : vector<16x128xf32> to vector<16x128xbf16>
    %c0_2 = arith.constant 0 : index
    %c0_3 = arith.constant 0 : index
    %3 = vector.load %arg3[%c0_2, %c0_3] : memref<128x128xbf16, #tpu.memory_space<vmem>>, vector<128x128xbf16>
    %cst = arith.constant dense<0.000000e+00> : vector<16x128xf32>
    %4 = tpu.matmul %2, %3, %cst {dimension_numbers = #tpu.dot_dimension_numbers<[1], [0], [0], [1], [0, 0, 1, 1], [], []>} : vector<16x128xbf16>, vector<128x128xbf16>, vector<16x128xf32> -> vector<16x128xf32>
    %c0_4 = arith.constant 0 : index
    %c0_5 = arith.constant 0 : index
    %5 = vector.load %arg4[%c0_4, %c0_5] : memref<1x128xf32, #tpu.memory_space<vmem>>, vector<1x128xf32>
    %6 = vector.broadcast %5 : vector<1x128xf32> to vector<16x128xf32>
    %7 = arith.addf %4, %6 : vector<16x128xf32>
    %cst_6 = arith.constant 0.000000e+00 : f32
    %8 = vector.broadcast %cst_6 : f32 to vector<16x128xf32>
    %9 = arith.maximumf %7, %8 : vector<16x128xf32>
    %c0_7 = arith.constant 0 : index
    %c0_8 = arith.constant 0 : index
    %10 = vector.load %arg10[%c0_7, %c0_8] : memref<16x128xf32, #tpu.memory_space<vmem>>, vector<16x128xf32>
    tpu.vector_store %arg10[%c0_7, %c0_8], %9 {strides = array<i32>} : memref<16x128xf32, #tpu.memory_space<vmem>>, vector<16x128xf32>,
    %c0_i32 = arith.constant 0 : i32
    %11 = arith.cmpi sgt, %0, %c0_i32 : i32
    %12 = arith.extui %11 : i1 to i32
    %c0_i32_9 = arith.constant 0 : i32
    %13 = arith.cmpi ne, %12, %c0_i32_9 : i32
    scf.if %13 {
      %c0_21 = arith.constant 0 : index
      %c0_22 = arith.constant 0 : index
      %28 = vector.load %arg10[%c0_21, %c0_22] : memref<16x128xf32, #tpu.memory_space<vmem>>, vector<16x128xf32>
      %29 = arith.truncf %28 : vector<16x128xf32> to vector<16x128xbf16>
      %c0_23 = arith.constant 0 : index
      %c0_24 = arith.constant 0 : index
      %30 = vector.load %arg5[%c0_23, %c0_24] : memref<128x128xbf16, #tpu.memory_space<vmem>>, vector<128x128xbf16>
      %cst_25 = arith.constant dense<0.000000e+00> : vector<16x128xf32>
      %31 = tpu.matmul %29, %30, %cst_25 {dimension_numbers = #tpu.dot_dimension_numbers<[1], [0], [0], [1], [0, 0, 1, 1], [], []>} : vector<16x128xbf16>, vector<128x128xbf16>, vector<16x128xf32> -> vector<16x128xf32>
      %c0_26 = arith.constant 0 : index
      %c0_27 = arith.constant 0 : index
      %32 = vector.load %arg6[%c0_26, %c0_27] : memref<1x128xf32, #tpu.memory_space<vmem>>, vector<1x128xf32>
      %33 = vector.broadcast %32 : vector<1x128xf32> to vector<16x128xf32>
      %34 = arith.addf %31, %33 : vector<16x128xf32>
      %cst_28 = arith.constant 0.000000e+00 : f32
      %35 = vector.broadcast %cst_28 : f32 to vector<16x128xf32>
      %36 = arith.maximumf %34, %35 : vector<16x128xf32>
      %c0_29 = arith.constant 0 : index
      %c0_30 = arith.constant 0 : index
      %37 = vector.load %arg10[%c0_29, %c0_30] : memref<16x128xf32, #tpu.memory_space<vmem>>, vector<16x128xf32>
      tpu.vector_store %arg10[%c0_29, %c0_30], %36 {strides = array<i32>} : memref<16x128xf32, #tpu.memory_space<vmem>>, vector<16x128xf32>,
    } else {
    }
    %c1_i32 = arith.constant 1 : i32
    %14 = arith.cmpi sgt, %0, %c1_i32 : i32
    %15 = arith.extui %14 : i1 to i32
    %c0_i32_10 = arith.constant 0 : i32
    %16 = arith.cmpi ne, %15, %c0_i32_10 : i32
    scf.if %16 {
      %c0_21 = arith.constant 0 : index
      %c0_22 = arith.constant 0 : index
      %28 = vector.load %arg10[%c0_21, %c0_22] : memref<16x128xf32, #tpu.memory_space<vmem>>, vector<16x128xf32>
      %29 = arith.truncf %28 : vector<16x128xf32> to vector<16x128xbf16>
      %c0_23 = arith.constant 0 : index
      %c0_24 = arith.constant 0 : index
      %30 = vector.load %arg5[%c0_23, %c0_24] : memref<128x128xbf16, #tpu.memory_space<vmem>>, vector<128x128xbf16>
      %cst_25 = arith.constant dense<0.000000e+00> : vector<16x128xf32>
      %31 = tpu.matmul %29, %30, %cst_25 {dimension_numbers = #tpu.dot_dimension_numbers<[1], [0], [0], [1], [0, 0, 1, 1], [], []>} : vector<16x128xbf16>, vector<128x128xbf16>, vector<16x128xf32> -> vector<16x128xf32>
      %c0_26 = arith.constant 0 : index
      %c0_27 = arith.constant 0 : index
      %32 = vector.load %arg6[%c0_26, %c0_27] : memref<1x128xf32, #tpu.memory_space<vmem>>, vector<1x128xf32>
      %33 = vector.broadcast %32 : vector<1x128xf32> to vector<16x128xf32>
      %34 = arith.addf %31, %33 : vector<16x128xf32>
      %cst_28 = arith.constant 0.000000e+00 : f32
      %35 = vector.broadcast %cst_28 : f32 to vector<16x128xf32>
      %36 = arith.maximumf %34, %35 : vector<16x128xf32>
      %c0_29 = arith.constant 0 : index
      %c0_30 = arith.constant 0 : index
      %37 = vector.load %arg10[%c0_29, %c0_30] : memref<16x128xf32, #tpu.memory_space<vmem>>, vector<16x128xf32>
      tpu.vector_store %arg10[%c0_29, %c0_30], %36 {strides = array<i32>} : memref<16x128xf32, #tpu.memory_space<vmem>>, vector<16x128xf32>,
    } else {
    }
    %c2_i32 = arith.constant 2 : i32
    %17 = arith.cmpi sgt, %0, %c2_i32 : i32
    %18 = arith.extui %17 : i1 to i32
    %c0_i32_11 = arith.constant 0 : i32
    %19 = arith.cmpi ne, %18, %c0_i32_11 : i32
    scf.if %19 {
      %c0_21 = arith.constant 0 : index
      %c0_22 = arith.constant 0 : index
      %28 = vector.load %arg10[%c0_21, %c0_22] : memref<16x128xf32, #tpu.memory_space<vmem>>, vector<16x128xf32>
      %29 = arith.truncf %28 : vector<16x128xf32> to vector<16x128xbf16>
      %c0_23 = arith.constant 0 : index
      %c0_24 = arith.constant 0 : index
      %30 = vector.load %arg5[%c0_23, %c0_24] : memref<128x128xbf16, #tpu.memory_space<vmem>>, vector<128x128xbf16>
      %cst_25 = arith.constant dense<0.000000e+00> : vector<16x128xf32>
      %31 = tpu.matmul %29, %30, %cst_25 {dimension_numbers = #tpu.dot_dimension_numbers<[1], [0], [0], [1], [0, 0, 1, 1], [], []>} : vector<16x128xbf16>, vector<128x128xbf16>, vector<16x128xf32> -> vector<16x128xf32>
      %c0_26 = arith.constant 0 : index
      %c0_27 = arith.constant 0 : index
      %32 = vector.load %arg6[%c0_26, %c0_27] : memref<1x128xf32, #tpu.memory_space<vmem>>, vector<1x128xf32>
      %33 = vector.broadcast %32 : vector<1x128xf32> to vector<16x128xf32>
      %34 = arith.addf %31, %33 : vector<16x128xf32>
      %cst_28 = arith.constant 0.000000e+00 : f32
      %35 = vector.broadcast %cst_28 : f32 to vector<16x128xf32>
      %36 = arith.maximumf %34, %35 : vector<16x128xf32>
      %c0_29 = arith.constant 0 : index
      %c0_30 = arith.constant 0 : index
      %37 = vector.load %arg10[%c0_29, %c0_30] : memref<16x128xf32, #tpu.memory_space<vmem>>, vector<16x128xf32>
      tpu.vector_store %arg10[%c0_29, %c0_30], %36 {strides = array<i32>} : memref<16x128xf32, #tpu.memory_space<vmem>>, vector<16x128xf32>,
    } else {
    }
    %c0_12 = arith.constant 0 : index
    %c0_13 = arith.constant 0 : index
    %20 = vector.load %arg10[%c0_12, %c0_13] : memref<16x128xf32, #tpu.memory_space<vmem>>, vector<16x128xf32>
    %21 = arith.truncf %20 : vector<16x128xf32> to vector<16x128xbf16>
    %c0_14 = arith.constant 0 : index
    %c0_15 = arith.constant 0 : index
    %22 = vector.load %arg7[%c0_14, %c0_15] : memref<128x128xbf16, #tpu.memory_space<vmem>>, vector<128x128xbf16>
    %cst_16 = arith.constant dense<0.000000e+00> : vector<16x128xf32>
    %23 = tpu.matmul %21, %22, %cst_16 {dimension_numbers = #tpu.dot_dimension_numbers<[1], [0], [0], [1], [0, 0, 1, 1], [], []>} : vector<16x128xbf16>, vector<128x128xbf16>, vector<16x128xf32> -> vector<16x128xf32>
    %c0_17 = arith.constant 0 : index
    %c0_18 = arith.constant 0 : index
    %24 = vector.load %arg8[%c0_17, %c0_18] : memref<1x128xf32, #tpu.memory_space<vmem>>, vector<1x128xf32>
    %25 = vector.broadcast %24 : vector<1x128xf32> to vector<16x128xf32>
    %26 = arith.addf %23, %25 : vector<16x128xf32>
    %c0_19 = arith.constant 0 : index
    %c0_20 = arith.constant 0 : index
    %27 = vector.load %arg9[%c0_19, %c0_20] : memref<16x128xf32, #tpu.memory_space<vmem>>, vector<16x128xf32>
    tpu.vector_store %arg9[%c0_19, %c0_20], %26 {strides = array<i32>} : memref<16x128xf32, #tpu.memory_space<vmem>>, vector<16x128xf32>,
    return
  }
  func.func @transform_0(%arg0: i32, %arg1: memref<1xi32, #tpu.memory_space<smem>>) -> (i32, i32) {
    %c0_i32 = arith.constant 0 : i32
    %c0_i32_0 = arith.constant 0 : i32
    return %arg0, %c0_i32 : i32, i32
  }
  func.func @transform_1(%arg0: i32, %arg1: memref<1xi32, #tpu.memory_space<smem>>) -> (i32, i32) {
    %c0_i32 = arith.constant 0 : i32
    %c0_i32_0 = arith.constant 0 : i32
    %c0_i32_1 = arith.constant 0 : i32
    return %c0_i32, %c0_i32_0 : i32, i32
  }
  func.func @transform_2(%arg0: i32, %arg1: memref<1xi32, #tpu.memory_space<smem>>) -> (i32, i32) {
    %c0_i32 = arith.constant 0 : i32
    %c0_i32_0 = arith.constant 0 : i32
    %c0_i32_1 = arith.constant 0 : i32
    return %c0_i32, %c0_i32_0 : i32, i32
  }
  func.func @transform_3(%arg0: i32, %arg1: memref<1xi32, #tpu.memory_space<smem>>) -> (i32, i32) {
    %c0_i32 = arith.constant 0 : i32
    %c0_i32_0 = arith.constant 0 : i32
    %c0_i32_1 = arith.constant 0 : i32
    return %c0_i32, %c0_i32_0 : i32, i32
  }
  func.func @transform_4(%arg0: i32, %arg1: memref<1xi32, #tpu.memory_space<smem>>) -> (i32, i32) {
    %c0_i32 = arith.constant 0 : i32
    %c0_i32_0 = arith.constant 0 : i32
    %c0_i32_1 = arith.constant 0 : i32
    return %c0_i32, %c0_i32_0 : i32, i32
  }
  func.func @transform_5(%arg0: i32, %arg1: memref<1xi32, #tpu.memory_space<smem>>) -> (i32, i32) {
    %c0_i32 = arith.constant 0 : i32
    %c0_i32_0 = arith.constant 0 : i32
    %c0_i32_1 = arith.constant 0 : i32
    return %c0_i32, %c0_i32_0 : i32, i32
  }
  func.func @transform_6(%arg0: i32, %arg1: memref<1xi32, #tpu.memory_space<smem>>) -> (i32, i32) {
    %c0_i32 = arith.constant 0 : i32
    %c0_i32_0 = arith.constant 0 : i32
    %c0_i32_1 = arith.constant 0 : i32
    return %c0_i32, %c0_i32_0 : i32, i32
  }
  func.func @transform_7(%arg0: i32, %arg1: memref<1xi32, #tpu.memory_space<smem>>) -> (i32, i32) {
    %c0_i32 = arith.constant 0 : i32
    %c0_i32_0 = arith.constant 0 : i32
    return %arg0, %c0_i32 : i32, i32
  }
}

</mosaic_0001>

<llo_original>
// kernel: _dynamic_net_impl.1
$region0: #{_dynamic_net_impl.1}
  #allocation0 [shape = 'u32[]', space=smem, size = 0x4, offset = 0x4, fixed_abs, tag = 'smem constant byte address 0x4 - core index']
  #allocation1 [shape = 'u32[144,128]{1,0:T(1,128)}', space=vmem, size = 0x12000, scoped, tag = 'internal scratch']
  #allocation2 [shape = 'f32[16,128]{1,0:T(8,128)}', space=vmem, size = 0x2000, scoped, tag = 'scratch operand']
  #allocation3 [shape = 's32[1]{0}', space=sflag, size = 0x4, scoped, tag = 'scoped memory for _dynamic_net_impl.1']
  #allocation4 [shape = 's32[1]{0:T(128)S(6)}', space=smem, size = 0x200, scoped, tag = 'prefetched SMEM operand 0']
  %s0 = inlined_call_operand.<no memory space> [shape: s32[1], index: 0, kind: input, shape index: {}]
  %s1 = inlined_call_operand.vmem [shape: f32[32,128], index: 1, kind: input, shape index: {}]
  %s2 = inlined_call_operand.vmem [shape: bf16[128,128], index: 2, kind: input, shape index: {}]
  %s3 = inlined_call_operand.vmem [shape: f32[1,128], index: 3, kind: input, shape index: {}]
  %s4 = inlined_call_operand.hbm [shape: bf16[128,128], index: 4, kind: input, shape index: {}]
  %s5 = inlined_call_operand.vmem [shape: f32[1,128], index: 5, kind: input, shape index: {}]
  %s6 = inlined_call_operand.hbm [shape: bf16[128,128], index: 6, kind: input, shape index: {}]
  %s7 = inlined_call_operand.vmem [shape: f32[1,128], index: 7, kind: input, shape index: {}]
  %s8 = inlined_call_operand.vmem [shape: f32[32,128], index: 8, kind: output, shape index: {}]
  %s9 = sld [smem:[#allocation0]]
  $region81: #{_dynamic_net_impl.1} parent=0
    _
  %s11 = ssub.s32 1, %s9
  %s12 = scalar_select 0, %s11, %s9
  %13 = sst [smem:[#allocation4]] %s0
  $region1: #{_dynamic_net_impl.1} parent=0
    #allocation5 [shape = 'u8[32768]{0}', space=vmem, size = 0x8000, scoped, tag = 'input window, operand 4, single buffered']
    #allocation6 [shape = 's32[2]{0}', space=sflag, size = 0x8, scoped, tag = 'scoped memory for _dynamic_net_impl.1']
    #allocation7 [shape = 'u8[32768]{0}', space=vmem, size = 0x8000, scoped, tag = 'input window, operand 6, single buffered']
    #allocation8 [shape = 's32[1]{0}', space=sflag, size = 0x4, scoped, tag = 'scoped memory for _dynamic_net_impl.1']
    %14 = vsyncpa [#allocation6], 0
    %15 = vsyncpa [#allocation8], 0
    loop: start=0, step=1, limit=4
    $region2: #{_dynamic_net_impl.1} parent=1 // loop_pre_header
      _
    $region3: #{_dynamic_net_impl.1} parent=1 // loop_header
      %s17 = sphi 0, %s21
      %p18 = scmp.ge.s32.totalorder %s17, 4
      %s27 = sphi 0, %s29
      %s30 = sphi 0, %s27
      %s31 = sphi 0, %s30
      %s47 = sphi 0, %s31
      %s51 = sphi 0, %s51
      %s53 = sphi 0, %s51
      %s54 = sphi 0, %s53
      %s68 = sphi 0, %s54
      %s72 = sphi 0, %s72
      %s74 = sphi 0, %s72
      %s75 = sphi 0, %s74
      %s89 = sphi 0, %s75
      %s93 = sphi 0, %s93
      %s95 = sphi 0, %s93
      %s96 = sphi 0, %s95
      %s110 = sphi 0, %s96
      %s114 = sphi 0, %s114
      %s116 = sphi 0, %s114
      %s117 = sphi 0, %s116
      %s131 = sphi 0, %s117
      %s135 = sphi 0, %s135
      %s137 = sphi 0, %s135
      %s138 = sphi 0, %s137
      %s152 = sphi 0, %s138
      %s156 = sphi 0, %s156
      %s158 = sphi 0, %s156
      %s159 = sphi 0, %s158
      %s173 = sphi 0, %s159
      %s179 = sphi 0, %s181
      %s182 = sphi 0, %s179
      %s183 = sphi 0, %s182
      %s199 = sphi 0, %s183
    $region4: #{_dynamic_net_impl.1} parent=1 // loop_header_branch
      %20 = sbr.rel (%p18) target = $region8
    $region5: #{_dynamic_net_impl.1} parent=1 // loop_body
      %s22 = ssub.s32 %s17, 1
      %s23 = ssub.s32 %s17, 2
      %s24 = sadd.s32 %s17, 1
      %s25 = ssub.s32 %s17, %s24
      %p26 = scmp.eq.s32.totalorder %s25, 0
      %s28 = sadd.s32 %s27, 1
      %s29 = scalar_select %p26, %s27, %s28
      %p32 = pneg %p26
      %p33 = scmp.eq.s32.totalorder %s17, 1
      %p34 = por %p32, %p33
      %p35 = scmp.ne.s32.totalorder %s27, %s30
      %p36 = scmp.eq.s32.totalorder %s17, 0
      %p37 = por %p35, %p36
      %p38 = scmp.ne.s32.totalorder %s27, %s30
      %p39 = scmp.eq.s32.totalorder %s22, 1
      %p40 = por %p38, %p39
      %p41 = scmp.ne.s32.totalorder %s30, %s31
      %p42 = scmp.eq.s32.totalorder %s22, 0
      %p43 = por %p41, %p42
      %p44 = scmp.ne.s32.totalorder %s30, %s31
      %p45 = scmp.eq.s32.totalorder %s23, 1
      %p46 = por %p44, %p45
      %p48 = scmp.ne.s32.totalorder %s31, %s47
      %p49 = scmp.eq.s32.totalorder %s23, 0
      %p50 = por %p48, %p49
      %s52 = sadd.s32 %s51, 1
      %p55 = scmp.eq.s32.totalorder %s17, 1
      %p56 = scmp.ne.s32.totalorder %s51, %s53
      %p57 = scmp.eq.s32.totalorder %s17, 0
      %p58 = por %p56, %p57
      %p59 = scmp.ne.s32.totalorder %s51, %s53
      %p60 = scmp.eq.s32.totalorder %s22, 1
      %p61 = por %p59, %p60
      %p62 = scmp.ne.s32.totalorder %s53, %s54
      %p63 = scmp.eq.s32.totalorder %s22, 0
      %p64 = por %p62, %p63
      %p65 = scmp.ne.s32.totalorder %s53, %s54
      %p66 = scmp.eq.s32.totalorder %s23, 1
      %p67 = por %p65, %p66
      %p69 = scmp.ne.s32.totalorder %s54, %s68
      %p70 = scmp.eq.s32.totalorder %s23, 0
      %p71 = por %p69, %p70
      %s73 = sadd.s32 %s72, 1
      %p76 = scmp.eq.s32.totalorder %s17, 1
      %p77 = scmp.ne.s32.totalorder %s72, %s74
      %p78 = scmp.eq.s32.totalorder %s17, 0
      %p79 = por %p77, %p78
      %p80 = scmp.ne.s32.totalorder %s72, %s74
      %p81 = scmp.eq.s32.totalorder %s22, 1
      %p82 = por %p80, %p81
      %p83 = scmp.ne.s32.totalorder %s74, %s75
      %p84 = scmp.eq.s32.totalorder %s22, 0
      %p85 = por %p83, %p84
      %p86 = scmp.ne.s32.totalorder %s74, %s75
      %p87 = scmp.eq.s32.totalorder %s23, 1
      %p88 = por %p86, %p87
      %p90 = scmp.ne.s32.totalorder %s75, %s89
      %p91 = scmp.eq.s32.totalorder %s23, 0
      %p92 = por %p90, %p91
      %s94 = sadd.s32 %s93, 1
      %p97 = scmp.eq.s32.totalorder %s17, 1
      %p98 = scmp.ne.s32.totalorder %s93, %s95
      %p99 = scmp.eq.s32.totalorder %s17, 0
      %p100 = por %p98, %p99
      %p101 = scmp.ne.s32.totalorder %s93, %s95
      %p102 = scmp.eq.s32.totalorder %s22, 1
      %p103 = por %p101, %p102
      %p104 = scmp.ne.s32.totalorder %s95, %s96
      %p105 = scmp.eq.s32.totalorder %s22, 0
      %p106 = por %p104, %p105
      %p107 = scmp.ne.s32.totalorder %s95, %s96
      %p108 = scmp.eq.s32.totalorder %s23, 1
      %p109 = por %p107, %p108
      %p111 = scmp.ne.s32.totalorder %s96, %s110
      %p112 = scmp.eq.s32.totalorder %s23, 0
      %p113 = por %p111, %p112
      %s115 = sadd.s32 %s114, 1
      %p118 = scmp.eq.s32.totalorder %s17, 1
      %p119 = scmp.ne.s32.totalorder %s114, %s116
      %p120 = scmp.eq.s32.totalorder %s17, 0
      %p121 = por %p119, %p120
      %p122 = scmp.ne.s32.totalorder %s114, %s116
      %p123 = scmp.eq.s32.totalorder %s22, 1
      %p124 = por %p122, %p123
      %p125 = scmp.ne.s32.totalorder %s116, %s117
      %p126 = scmp.eq.s32.totalorder %s22, 0
      %p127 = por %p125, %p126
      %p128 = scmp.ne.s32.totalorder %s116, %s117
      %p129 = scmp.eq.s32.totalorder %s23, 1
      %p130 = por %p128, %p129
      %p132 = scmp.ne.s32.totalorder %s117, %s131
      %p133 = scmp.eq.s32.totalorder %s23, 0
      %p134 = por %p132, %p133
      %s136 = sadd.s32 %s135, 1
      %p139 = scmp.eq.s32.totalorder %s17, 1
      %p140 = scmp.ne.s32.totalorder %s135, %s137
      %p141 = scmp.eq.s32.totalorder %s17, 0
      %p142 = por %p140, %p141
      %p143 = scmp.ne.s32.totalorder %s135, %s137
      %p144 = scmp.eq.s32.totalorder %s22, 1
      %p145 = por %p143, %p144
      %p146 = scmp.ne.s32.totalorder %s137, %s138
      %p147 = scmp.eq.s32.totalorder %s22, 0
      %p148 = por %p146, %p147
      %p149 = scmp.ne.s32.totalorder %s137, %s138
      %p150 = scmp.eq.s32.totalorder %s23, 1
      %p151 = por %p149, %p150
      %p153 = scmp.ne.s32.totalorder %s138, %s152
      %p154 = scmp.eq.s32.totalorder %s23, 0
      %p155 = por %p153, %p154
      %s157 = sadd.s32 %s156, 1
      %p160 = scmp.eq.s32.totalorder %s17, 1
      %p161 = scmp.ne.s32.totalorder %s156, %s158
      %p162 = scmp.eq.s32.totalorder %s17, 0
      %p163 = por %p161, %p162
      %p164 = scmp.ne.s32.totalorder %s156, %s158
      %p165 = scmp.eq.s32.totalorder %s22, 1
      %p166 = por %p164, %p165
      %p167 = scmp.ne.s32.totalorder %s158, %s159
      %p168 = scmp.eq.s32.totalorder %s22, 0
      %p169 = por %p167, %p168
      %p170 = scmp.ne.s32.totalorder %s158, %s159
      %p171 = scmp.eq.s32.totalorder %s23, 1
      %p172 = por %p170, %p171
      %p174 = scmp.ne.s32.totalorder %s159, %s173
      %p175 = scmp.eq.s32.totalorder %s23, 0
      %p176 = por %p174, %p175
      %s177 = ssub.s32 %s17, %s24
      %p178 = scmp.eq.s32.totalorder %s177, 0
      %s180 = sadd.s32 %s179, 1
      %s181 = scalar_select %p178, %s179, %s180
      %p184 = pneg %p178
      %p185 = scmp.eq.s32.totalorder %s17, 1
      %p186 = por %p184, %p185
      %p187 = scmp.ne.s32.totalorder %s179, %s182
      %p188 = scmp.eq.s32.totalorder %s17, 0
      %p189 = por %p187, %p188
      %p190 = scmp.ne.s32.totalorder %s179, %s182
      %p191 = scmp.eq.s32.totalorder %s22, 1
      %p192 = por %p190, %p191
      %p193 = scmp.ne.s32.totalorder %s182, %s183
      %p194 = scmp.eq.s32.totalorder %s22, 0
      %p195 = por %p193, %p194
      %p196 = scmp.ne.s32.totalorder %s182, %s183
      %p197 = scmp.eq.s32.totalorder %s23, 1
      %p198 = por %p196, %p197
      %p200 = scmp.ne.s32.totalorder %s183, %s199
      %p201 = scmp.eq.s32.totalorder %s23, 0
      %p202 = por %p200, %p201
      %p203 = scmp.le.s32.totalorder 1, %s17
      %p204 = scmp.lt.s32.totalorder %s17, 3
      %p205 = pnand %p203, %p204
      %p206 = pneg %p205
      // Predicated region
      $region9: #{_dynamic_net_impl.1} parent=5 // pred_check
        _
      $region10: #{_dynamic_net_impl.1} parent=5 // pred_check_branch
        %208 = sbr.rel (%p205) target = $region12
      $region11: #{_dynamic_net_impl.1} parent=5 // pred_region
        %s209 = ssub.s32 %s17, 1
        // Predicated region
        $region13: #{_dynamic_net_impl.1} parent=11 // pred_check
          %p210 = pneg %p64
        $region14: #{_dynamic_net_impl.1} parent=11 // pred_check_branch
          %212 = sbr.rel (%p210) target = $region16
        $region15: #{_dynamic_net_impl.1} parent=11 // pred_region
          _
        $region16: #{_dynamic_net_impl.1} parent=11 // pred_fallthru
          _
        // Predicated region
        $region17: #{_dynamic_net_impl.1} parent=11 // pred_check
          %p213 = pneg %p85
        $region18: #{_dynamic_net_impl.1} parent=11 // pred_check_branch
          %215 = sbr.rel (%p213) target = $region20
        $region19: #{_dynamic_net_impl.1} parent=11 // pred_region
          _
        $region20: #{_dynamic_net_impl.1} parent=11 // pred_fallthru
          _
        // Predicated region
        $region21: #{_dynamic_net_impl.1} parent=11 // pred_check
          %p216 = pneg %p106
        $region22: #{_dynamic_net_impl.1} parent=11 // pred_check_branch
          %218 = sbr.rel (%p216) target = $region24
        $region23: #{_dynamic_net_impl.1} parent=11 // pred_region
          %s220 = ssub.s32 1024, 1024
          %221 = vsyncadd [#allocation6], %s220
          %s222 = sshll.u32 [#allocation5], 4
          %s223 = int_to_ptr.vmem [resolvable:$true] %s222
          %228 = dma.hbm_to_vmem [thread:$0]  %s4, 1024, %s223, [#allocation6], 64, 64, 4
        $region24: #{_dynamic_net_impl.1} parent=11 // pred_fallthru
          _
        // Predicated region
        $region25: #{_dynamic_net_impl.1} parent=11 // pred_check
          %p229 = pneg %p127
        $region26: #{_dynamic_net_impl.1} parent=11 // pred_check_branch
          %231 = sbr.rel (%p229) target = $region28
        $region27: #{_dynamic_net_impl.1} parent=11 // pred_region
          _
        $region28: #{_dynamic_net_impl.1} parent=11 // pred_fallthru
          _
        // Predicated region
        $region29: #{_dynamic_net_impl.1} parent=11 // pred_check
          %p232 = pneg %p148
        $region30: #{_dynamic_net_impl.1} parent=11 // pred_check_branch
          %234 = sbr.rel (%p232) target = $region32
        $region31: #{_dynamic_net_impl.1} parent=11 // pred_region
          %s236 = ssub.s32 1024, 1024
          %237 = vsyncadd [#allocation8], %s236
          %s238 = sshll.u32 [#allocation7], 4
          %s239 = int_to_ptr.vmem [resolvable:$true] %s238
          %244 = dma.hbm_to_vmem [thread:$0]  %s6, 1024, %s239, [#allocation8], 64, 64, 4
        $region32: #{_dynamic_net_impl.1} parent=11 // pred_fallthru
          _
        // Predicated region
        $region33: #{_dynamic_net_impl.1} parent=11 // pred_check
          %p245 = pneg %p169
        $region34: #{_dynamic_net_impl.1} parent=11 // pred_check_branch
          %247 = sbr.rel (%p245) target = $region36
        $region35: #{_dynamic_net_impl.1} parent=11 // pred_region
          _
        $region36: #{_dynamic_net_impl.1} parent=11 // pred_fallthru
          _
      $region12: #{_dynamic_net_impl.1} parent=5 // pred_fallthru
        _
      %p248 = scmp.lt.s32.totalorder %s17, 2
      // Predicated region
      $region37: #{_dynamic_net_impl.1} parent=5 // pred_check
        %p249 = pneg %p248
      $region38: #{_dynamic_net_impl.1} parent=5 // pred_check_branch
        %251 = sbr.rel (%p249) target = $region40
      $region39: #{_dynamic_net_impl.1} parent=5 // pred_region
        // Predicated region
        $region41: #{_dynamic_net_impl.1} parent=39 // pred_check
          %p252 = pneg %p37
        $region42: #{_dynamic_net_impl.1} parent=39 // pred_check_branch
          %254 = sbr.rel (%p252) target = $region44
        $region43: #{_dynamic_net_impl.1} parent=39 // pred_region
          %s255 = smul.u32 2, %s17
          %p256 = scmp.lt.s32.totalorder %s255, 3
          %s257 = scalar_select %p256, %s255, 3
          %s258 = smul.addr %s257, 8
          %s259 = scalar_lea.vmem %s1, %s258
          %s260 = smul.u32 2, %s17
        $region44: #{_dynamic_net_impl.1} parent=39 // pred_fallthru
          _
      $region40: #{_dynamic_net_impl.1} parent=5 // pred_fallthru
        _
      %p261 = scmp.le.s32.totalorder 1, %s17
      %p262 = scmp.lt.s32.totalorder %s17, 3
      %p263 = pnand %p261, %p262
      %p264 = pneg %p263
      // Predicated region
      $region45: #{_dynamic_net_impl.1} parent=5 // pred_check
        _
      $region46: #{_dynamic_net_impl.1} parent=5 // pred_check_branch
        %266 = sbr.rel (%p263) target = $region48
      $region47: #{_dynamic_net_impl.1} parent=5 // pred_region
        %s267 = ssub.s32 %s17, 1
        // Predicated region
        $region49: #{_dynamic_net_impl.1} parent=47 // pred_check
          %p268 = pneg %p106
        $region50: #{_dynamic_net_impl.1} parent=47 // pred_check_branch
          %270 = sbr.rel (%p268) target = $region52
        $region51: #{_dynamic_net_impl.1} parent=47 // pred_region
          %271 = dma.done [#allocation6], 1024
        $region52: #{_dynamic_net_impl.1} parent=47 // pred_fallthru
          _
        // Predicated region
        $region53: #{_dynamic_net_impl.1} parent=47 // pred_check
          %p272 = pneg %p148
        $region54: #{_dynamic_net_impl.1} parent=47 // pred_check_branch
          %274 = sbr.rel (%p272) target = $region56
        $region55: #{_dynamic_net_impl.1} parent=47 // pred_region
          %275 = dma.done [#allocation8], 1024
        $region56: #{_dynamic_net_impl.1} parent=47 // pred_fallthru
          _
        %s276 = smul.u32 2, %s22
        %p277 = scmp.lt.s32.totalorder %s276, 3
        %s278 = scalar_select %p277, %s276, 3
        %s279 = smul.addr %s278, 8
        %s280 = scalar_lea.vmem %s1, %s279
        %p281 = pneg %p43
        %p282 = pneg %p40
        %p283 = pneg %p64
        %p284 = pneg %p61
        %p285 = pneg %p85
        %p286 = pneg %p82
        %p287 = pneg %p106
        %p288 = pneg %p103
        %p289 = pneg %p127
        %p290 = pneg %p124
        %p291 = pneg %p148
        %p292 = pneg %p145
        %p293 = pneg %p169
        %p294 = pneg %p166
        %p295 = pneg %p195
        %p296 = pneg %p192
        %s297 = smul.u32 2, %s22
        %p298 = scmp.lt.s32.totalorder %s297, 3
        %s299 = scalar_select %p298, %s297, 3
        %s300 = smul.addr %s299, 8
        %s301 = scalar_lea.vmem %s8, %s300
        %s302 = smul.u32 2, %s22
        %p303 = scmp.lt.s32.totalorder %s302, 3
        %s304 = scalar_select %p303, %s302, 3
        %s305 = smul.addr %s304, 8
        %s306 = scalar_lea.vmem %s1, %s305
        %s307 = smul.u32 2, %s22
        %s308 = smul.u32 2, %s22
        %p309 = scmp.lt.s32.totalorder %s308, 3
        %s310 = scalar_select %p309, %s308, 3
        %s311 = smul.addr %s310, 8
        %s312 = scalar_lea.vmem %s8, %s311
        %s313 = smul.u32 2, %s22
        %s315 = sld [smem:[#allocation4]]
        %v316 = vld [vmem:[%s306] sm:$0xff]
        %v317 = vld [vmem:[%s306 + $0x8] sm:$0xff]
        %v318 = vpack.c.bf16 %v317, %v316
        %v319 = vld [vmem:[%s2] sm:$0xf]
        %v320 = vld [vmem:[%s2 + $0x4] sm:$0xf]
        %v321 = vld [vmem:[%s2 + $0x8] sm:$0xf]
        %v322 = vld [vmem:[%s2 + $0xc] sm:$0xf]
        %v323 = vld [vmem:[%s2 + $0x10] sm:$0xf]
        %v324 = vld [vmem:[%s2 + $0x14] sm:$0xf]
        %v325 = vld [vmem:[%s2 + $0x18] sm:$0xf]
        %v326 = vld [vmem:[%s2 + $0x1c] sm:$0xf]
        %v327 = vld [vmem:[%s2 + $0x20] sm:$0xf]
        %v328 = vld [vmem:[%s2 + $0x24] sm:$0xf]
        %v329 = vld [vmem:[%s2 + $0x28] sm:$0xf]
        %v330 = vld [vmem:[%s2 + $0x2c] sm:$0xf]
        %v331 = vld [vmem:[%s2 + $0x30] sm:$0xf]
        %v332 = vld [vmem:[%s2 + $0x34] sm:$0xf]
        %v333 = vld [vmem:[%s2 + $0x38] sm:$0xf]
        %v334 = vld [vmem:[%s2 + $0x3c] sm:$0xf]
        %v335 = vld [vmem:[%s3] sm:$0x1]
        %v337 = vlaneseq
        %v338 = vshrl.u32 %v337, 7
        %v339 = vsub.s32 0, %v338
        %v340 = vrot.slane %v335, %v339
        %v358 = vunpack.c.l.b16 %v319
        %v359 = vunpack.c.l.b16 %v320
        %v360 = vunpack.c.l.b16 %v321
        %v361 = vunpack.c.l.b16 %v322
        %v362 = vunpack.c.l.b16 %v323
        %v363 = vunpack.c.l.b16 %v324
        %v364 = vunpack.c.l.b16 %v325
        %v365 = vunpack.c.l.b16 %v326
        %v366 = vunpack.c.l.b16 %v327
        %v367 = vunpack.c.l.b16 %v328
        %v368 = vunpack.c.l.b16 %v329
        %v369 = vunpack.c.l.b16 %v330
        %v370 = vunpack.c.l.b16 %v331
        %v371 = vunpack.c.l.b16 %v332
        %v372 = vunpack.c.l.b16 %v333
        %v373 = vunpack.c.l.b16 %v334
        %v374 = vpack.c.b16 %v359, %v358
        %v375 = vpack.c.b16 %v361, %v360
        %v376 = vpack.c.b16 %v363, %v362
        %v377 = vpack.c.b16 %v365, %v364
        %v378 = vpack.c.b16 %v367, %v366
        %v379 = vpack.c.b16 %v369, %v368
        %v380 = vpack.c.b16 %v371, %v370
        %v381 = vpack.c.b16 %v373, %v372
        %390 = vmatprep.subr.bf16.mxu0 0
        %391 = vmatpush1.bf16.msra.mxu0 %v374
        %392 = vmatprep.subr.bf16.mxu0 0
        %393 = vmatpush1.bf16.msra.mxu0 %v375
        %394 = vmatprep.subr.bf16.mxu0 0
        %395 = vmatpush1.bf16.msra.mxu0 %v376
        %396 = vmatprep.subr.bf16.mxu0 0
        %397 = vmatpush1.bf16.msra.mxu0 %v377
        %398 = vmatprep.subr.bf16.mxu0 0
        %399 = vmatpush1.bf16.msra.mxu0 %v378
        %400 = vmatprep.subr.bf16.mxu0 0
        %401 = vmatpush1.bf16.msra.mxu0 %v379
        %402 = vmatprep.subr.bf16.mxu0 0
        %403 = vmatpush1.bf16.msra.mxu0 %v380
        %404 = vmatprep.subr.bf16.mxu0 0
        %405 = vmatpush1.bf16.msra.mxu0 %v381
        %406 = vmatprep.subr.bf16.mxu0 0
        %407 = vmatpush1.bf16.msra.mxu0 0
        %408 = vmatprep.subr.bf16.mxu0 0
        %409 = vmatpush1.bf16.msra.mxu0 0
        %410 = vmatprep.subr.bf16.mxu0 0
        %411 = vmatpush1.bf16.msra.mxu0 0
        %412 = vmatprep.subr.bf16.mxu0 0
        %413 = vmatpush1.bf16.msra.mxu0 0
        %414 = vmatprep.subr.bf16.mxu0 0
        %415 = vmatpush1.bf16.msra.mxu0 0
        %416 = vmatprep.subr.bf16.mxu0 0
        %417 = vmatpush1.bf16.msra.mxu0 0
        %418 = vmatprep.subr.bf16.mxu0 0
        %419 = vmatpush1.bf16.msra.mxu0 0
        %420 = vmatprep.subr.bf16.mxu0 0
        %421 = vmatpush1.bf16.msra.mxu0 0
        %422 = vmatprep.mubr.bf16.mxu0 0
        %423 = vmatmul.mubr.bf16.gmra.mrb[0].mxu0 %v318
        %v424 = vpop.f32.mrb[0].mxu0
        %v425 = vadd.f32 %v340, %v424
        %v426 = vpop.f32.mrb[0].mxu0
        %v427 = vpop.f32.mrb[0].mxu0
        %v428 = vadd.f32 %v340, %v427
        %v429 = vpop.f32.mrb[0].mxu0
        %430 = vdwg.mxu0
        %v431 = vmax.f32 %v425, 0.0
        %v432 = vmax.f32 %v428, 0.0
        %433 = vst [vmem:[#allocation2] sm:$0xff] %v431
        %434 = vst [vmem:[#allocation2 + $0x8] sm:$0xff] %v432
        %p435 = scmp.gt.s32.totalorder %s315, 0
        // Predicated region
        $region57: #{_dynamic_net_impl.1} parent=47 // pred_check
          %p436 = pneg %p435
        $region58: #{_dynamic_net_impl.1} parent=47 // pred_check_branch
          %438 = sbr.rel (%p436) target = $region60
        $region59: #{_dynamic_net_impl.1} parent=47 // pred_region
          %v439 = vld [vmem:[#allocation2] sm:$0xff]
          %v440 = vld [vmem:[#allocation2 + $0x8] sm:$0xff]
          %v441 = vpack.c.bf16 %v440, %v439
          %v442 = vld [vmem:[#allocation5] sm:$0xf]
          %v443 = vld [vmem:[#allocation5 + $0x4] sm:$0xf]
          %v444 = vld [vmem:[#allocation5 + $0x8] sm:$0xf]
          %v445 = vld [vmem:[#allocation5 + $0xc] sm:$0xf]
          %v446 = vld [vmem:[#allocation5 + $0x10] sm:$0xf]
          %v447 = vld [vmem:[#allocation5 + $0x14] sm:$0xf]
          %v448 = vld [vmem:[#allocation5 + $0x18] sm:$0xf]
          %v449 = vld [vmem:[#allocation5 + $0x1c] sm:$0xf]
          %v450 = vld [vmem:[#allocation5 + $0x20] sm:$0xf]
          %v451 = vld [vmem:[#allocation5 + $0x24] sm:$0xf]
          %v452 = vld [vmem:[#allocation5 + $0x28] sm:$0xf]
          %v453 = vld [vmem:[#allocation5 + $0x2c] sm:$0xf]
          %v454 = vld [vmem:[#allocation5 + $0x30] sm:$0xf]
          %v455 = vld [vmem:[#allocation5 + $0x34] sm:$0xf]
          %v456 = vld [vmem:[#allocation5 + $0x38] sm:$0xf]
          %v457 = vld [vmem:[#allocation5 + $0x3c] sm:$0xf]
          %v458 = vld [vmem:[%s5] sm:$0x1]
          %v460 = vlaneseq
          %v461 = vshrl.u32 %v460, 7
          %v462 = vsub.s32 0, %v461
          %v463 = vrot.slane %v458, %v462
          %v481 = vunpack.c.l.b16 %v442
          %v482 = vunpack.c.l.b16 %v443
          %v483 = vunpack.c.l.b16 %v444
          %v484 = vunpack.c.l.b16 %v445
          %v485 = vunpack.c.l.b16 %v446
          %v486 = vunpack.c.l.b16 %v447
          %v487 = vunpack.c.l.b16 %v448
          %v488 = vunpack.c.l.b16 %v449
          %v489 = vunpack.c.l.b16 %v450
          %v490 = vunpack.c.l.b16 %v451
          %v491 = vunpack.c.l.b16 %v452
          %v492 = vunpack.c.l.b16 %v453
          %v493 = vunpack.c.l.b16 %v454
          %v494 = vunpack.c.l.b16 %v455
          %v495 = vunpack.c.l.b16 %v456
          %v496 = vunpack.c.l.b16 %v457
          %v497 = vpack.c.b16 %v482, %v481
          %v498 = vpack.c.b16 %v484, %v483
          %v499 = vpack.c.b16 %v486, %v485
          %v500 = vpack.c.b16 %v488, %v487
          %v501 = vpack.c.b16 %v490, %v489
          %v502 = vpack.c.b16 %v492, %v491
          %v503 = vpack.c.b16 %v494, %v493
          %v504 = vpack.c.b16 %v496, %v495
          %513 = vmatprep.subr.bf16.mxu0 0
          %514 = vmatpush1.bf16.msra.mxu0 %v497
          %515 = vmatprep.subr.bf16.mxu0 0
          %516 = vmatpush1.bf16.msra.mxu0 %v498
          %517 = vmatprep.subr.bf16.mxu0 0
          %518 = vmatpush1.bf16.msra.mxu0 %v499
          %519 = vmatprep.subr.bf16.mxu0 0
          %520 = vmatpush1.bf16.msra.mxu0 %v500
          %521 = vmatprep.subr.bf16.mxu0 0
          %522 = vmatpush1.bf16.msra.mxu0 %v501
          %523 = vmatprep.subr.bf16.mxu0 0
          %524 = vmatpush1.bf16.msra.mxu0 %v502
          %525 = vmatprep.subr.bf16.mxu0 0
          %526 = vmatpush1.bf16.msra.mxu0 %v503
          %527 = vmatprep.subr.bf16.mxu0 0
          %528 = vmatpush1.bf16.msra.mxu0 %v504
          %529 = vmatprep.subr.bf16.mxu0 0
          %530 = vmatpush1.bf16.msra.mxu0 0
          %531 = vmatprep.subr.bf16.mxu0 0
          %532 = vmatpush1.bf16.msra.mxu0 0
          %533 = vmatprep.subr.bf16.mxu0 0
          %534 = vmatpush1.bf16.msra.mxu0 0
          %535 = vmatprep.subr.bf16.mxu0 0
          %536 = vmatpush1.bf16.msra.mxu0 0
          %537 = vmatprep.subr.bf16.mxu0 0
          %538 = vmatpush1.bf16.msra.mxu0 0
          %539 = vmatprep.subr.bf16.mxu0 0
          %540 = vmatpush1.bf16.msra.mxu0 0
          %541 = vmatprep.subr.bf16.mxu0 0
          %542 = vmatpush1.bf16.msra.mxu0 0
          %543 = vmatprep.subr.bf16.mxu0 0
          %544 = vmatpush1.bf16.msra.mxu0 0
          %545 = vmatprep.mubr.bf16.mxu0 0
          %546 = vmatmul.mubr.bf16.gmra.mrb[0].mxu0 %v441
          %v547 = vpop.f32.mrb[0].mxu0
          %v548 = vadd.f32 %v463, %v547
          %v549 = vpop.f32.mrb[0].mxu0
          %v550 = vpop.f32.mrb[0].mxu0
          %v551 = vadd.f32 %v463, %v550
          %v552 = vpop.f32.mrb[0].mxu0
          %553 = vdwg.mxu0
          %v554 = vmax.f32 %v548, 0.0
          %v555 = vmax.f32 %v551, 0.0
          %556 = vst [vmem:[#allocation2] sm:$0xff] %v554
          %557 = vst [vmem:[#allocation2 + $0x8] sm:$0xff] %v555
        $region60: #{_dynamic_net_impl.1} parent=47 // pred_fallthru
          _
        %p558 = scmp.gt.s32.totalorder %s315, 1
        // Predicated region
        $region61: #{_dynamic_net_impl.1} parent=47 // pred_check
          %p559 = pneg %p558
        $region62: #{_dynamic_net_impl.1} parent=47 // pred_check_branch
          %561 = sbr.rel (%p559) target = $region64
        $region63: #{_dynamic_net_impl.1} parent=47 // pred_region
          %v562 = vld [vmem:[#allocation2] sm:$0xff]
          %v563 = vld [vmem:[#allocation2 + $0x8] sm:$0xff]
          %v564 = vpack.c.bf16 %v563, %v562
          %v565 = vld [vmem:[#allocation5] sm:$0xf]
          %v566 = vld [vmem:[#allocation5 + $0x4] sm:$0xf]
          %v567 = vld [vmem:[#allocation5 + $0x8] sm:$0xf]
          %v568 = vld [vmem:[#allocation5 + $0xc] sm:$0xf]
          %v569 = vld [vmem:[#allocation5 + $0x10] sm:$0xf]
          %v570 = vld [vmem:[#allocation5 + $0x14] sm:$0xf]
          %v571 = vld [vmem:[#allocation5 + $0x18] sm:$0xf]
          %v572 = vld [vmem:[#allocation5 + $0x1c] sm:$0xf]
          %v573 = vld [vmem:[#allocation5 + $0x20] sm:$0xf]
          %v574 = vld [vmem:[#allocation5 + $0x24] sm:$0xf]
          %v575 = vld [vmem:[#allocation5 + $0x28] sm:$0xf]
          %v576 = vld [vmem:[#allocation5 + $0x2c] sm:$0xf]
          %v577 = vld [vmem:[#allocation5 + $0x30] sm:$0xf]
          %v578 = vld [vmem:[#allocation5 + $0x34] sm:$0xf]
          %v579 = vld [vmem:[#allocation5 + $0x38] sm:$0xf]
          %v580 = vld [vmem:[#allocation5 + $0x3c] sm:$0xf]
          %v581 = vld [vmem:[%s5] sm:$0x1]
          %v583 = vlaneseq
          %v584 = vshrl.u32 %v583, 7
          %v585 = vsub.s32 0, %v584
          %v586 = vrot.slane %v581, %v585
          %v604 = vunpack.c.l.b16 %v565
          %v605 = vunpack.c.l.b16 %v566
          %v606 = vunpack.c.l.b16 %v567
          %v607 = vunpack.c.l.b16 %v568
          %v608 = vunpack.c.l.b16 %v569
          %v609 = vunpack.c.l.b16 %v570
          %v610 = vunpack.c.l.b16 %v571
          %v611 = vunpack.c.l.b16 %v572
          %v612 = vunpack.c.l.b16 %v573
          %v613 = vunpack.c.l.b16 %v574
          %v614 = vunpack.c.l.b16 %v575
          %v615 = vunpack.c.l.b16 %v576
          %v616 = vunpack.c.l.b16 %v577
          %v617 = vunpack.c.l.b16 %v578
          %v618 = vunpack.c.l.b16 %v579
          %v619 = vunpack.c.l.b16 %v580
          %v620 = vpack.c.b16 %v605, %v604
          %v621 = vpack.c.b16 %v607, %v606
          %v622 = vpack.c.b16 %v609, %v608
          %v623 = vpack.c.b16 %v611, %v610
          %v624 = vpack.c.b16 %v613, %v612
          %v625 = vpack.c.b16 %v615, %v614
          %v626 = vpack.c.b16 %v617, %v616
          %v627 = vpack.c.b16 %v619, %v618
          %636 = vmatprep.subr.bf16.mxu0 0
          %637 = vmatpush1.bf16.msra.mxu0 %v620
          %638 = vmatprep.subr.bf16.mxu0 0
          %639 = vmatpush1.bf16.msra.mxu0 %v621
          %640 = vmatprep.subr.bf16.mxu0 0
          %641 = vmatpush1.bf16.msra.mxu0 %v622
          %642 = vmatprep.subr.bf16.mxu0 0
          %643 = vmatpush1.bf16.msra.mxu0 %v623
          %644 = vmatprep.subr.bf16.mxu0 0
          %645 = vmatpush1.bf16.msra.mxu0 %v624
          %646 = vmatprep.subr.bf16.mxu0 0
          %647 = vmatpush1.bf16.msra.mxu0 %v625
          %648 = vmatprep.subr.bf16.mxu0 0
          %649 = vmatpush1.bf16.msra.mxu0 %v626
          %650 = vmatprep.subr.bf16.mxu0 0
          %651 = vmatpush1.bf16.msra.mxu0 %v627
          %652 = vmatprep.subr.bf16.mxu0 0
          %653 = vmatpush1.bf16.msra.mxu0 0
          %654 = vmatprep.subr.bf16.mxu0 0
          %655 = vmatpush1.bf16.msra.mxu0 0
          %656 = vmatprep.subr.bf16.mxu0 0
          %657 = vmatpush1.bf16.msra.mxu0 0
          %658 = vmatprep.subr.bf16.mxu0 0
          %659 = vmatpush1.bf16.msra.mxu0 0
          %660 = vmatprep.subr.bf16.mxu0 0
          %661 = vmatpush1.bf16.msra.mxu0 0
          %662 = vmatprep.subr.bf16.mxu0 0
          %663 = vmatpush1.bf16.msra.mxu0 0
          %664 = vmatprep.subr.bf16.mxu0 0
          %665 = vmatpush1.bf16.msra.mxu0 0
          %666 = vmatprep.subr.bf16.mxu0 0
          %667 = vmatpush1.bf16.msra.mxu0 0
          %668 = vmatprep.mubr.bf16.mxu0 0
          %669 = vmatmul.mubr.bf16.gmra.mrb[0].mxu0 %v564
          %v670 = vpop.f32.mrb[0].mxu0
          %v671 = vadd.f32 %v586, %v670
          %v672 = vpop.f32.mrb[0].mxu0
          %v673 = vpop.f32.mrb[0].mxu0
          %v674 = vadd.f32 %v586, %v673
          %v675 = vpop.f32.mrb[0].mxu0
          %676 = vdwg.mxu0
          %v677 = vmax.f32 %v671, 0.0
          %v678 = vmax.f32 %v674, 0.0
          %679 = vst [vmem:[#allocation2] sm:$0xff] %v677
          %680 = vst [vmem:[#allocation2 + $0x8] sm:$0xff] %v678
        $region64: #{_dynamic_net_impl.1} parent=47 // pred_fallthru
          _
        %p681 = scmp.gt.s32.totalorder %s315, 2
        // Predicated region
        $region65: #{_dynamic_net_impl.1} parent=47 // pred_check
          %p682 = pneg %p681
        $region66: #{_dynamic_net_impl.1} parent=47 // pred_check_branch
          %684 = sbr.rel (%p682) target = $region68
        $region67: #{_dynamic_net_impl.1} parent=47 // pred_region
          %v685 = vld [vmem:[#allocation2] sm:$0xff]
          %v686 = vld [vmem:[#allocation2 + $0x8] sm:$0xff]
          %v687 = vpack.c.bf16 %v686, %v685
          %v688 = vld [vmem:[#allocation5] sm:$0xf]
          %v689 = vld [vmem:[#allocation5 + $0x4] sm:$0xf]
          %v690 = vld [vmem:[#allocation5 + $0x8] sm:$0xf]
          %v691 = vld [vmem:[#allocation5 + $0xc] sm:$0xf]
          %v692 = vld [vmem:[#allocation5 + $0x10] sm:$0xf]
          %v693 = vld [vmem:[#allocation5 + $0x14] sm:$0xf]
          %v694 = vld [vmem:[#allocation5 + $0x18] sm:$0xf]
          %v695 = vld [vmem:[#allocation5 + $0x1c] sm:$0xf]
          %v696 = vld [vmem:[#allocation5 + $0x20] sm:$0xf]
          %v697 = vld [vmem:[#allocation5 + $0x24] sm:$0xf]
          %v698 = vld [vmem:[#allocation5 + $0x28] sm:$0xf]
          %v699 = vld [vmem:[#allocation5 + $0x2c] sm:$0xf]
          %v700 = vld [vmem:[#allocation5 + $0x30] sm:$0xf]
          %v701 = vld [vmem:[#allocation5 + $0x34] sm:$0xf]
          %v702 = vld [vmem:[#allocation5 + $0x38] sm:$0xf]
          %v703 = vld [vmem:[#allocation5 + $0x3c] sm:$0xf]
          %v704 = vld [vmem:[%s5] sm:$0x1]
          %v706 = vlaneseq
          %v707 = vshrl.u32 %v706, 7
          %v708 = vsub.s32 0, %v707
          %v709 = vrot.slane %v704, %v708
          %v727 = vunpack.c.l.b16 %v688
          %v728 = vunpack.c.l.b16 %v689
          %v729 = vunpack.c.l.b16 %v690
          %v730 = vunpack.c.l.b16 %v691
          %v731 = vunpack.c.l.b16 %v692
          %v732 = vunpack.c.l.b16 %v693
          %v733 = vunpack.c.l.b16 %v694
          %v734 = vunpack.c.l.b16 %v695
          %v735 = vunpack.c.l.b16 %v696
          %v736 = vunpack.c.l.b16 %v697
          %v737 = vunpack.c.l.b16 %v698
          %v738 = vunpack.c.l.b16 %v699
          %v739 = vunpack.c.l.b16 %v700
          %v740 = vunpack.c.l.b16 %v701
          %v741 = vunpack.c.l.b16 %v702
          %v742 = vunpack.c.l.b16 %v703
          %v743 = vpack.c.b16 %v728, %v727
          %v744 = vpack.c.b16 %v730, %v729
          %v745 = vpack.c.b16 %v732, %v731
          %v746 = vpack.c.b16 %v734, %v733
          %v747 = vpack.c.b16 %v736, %v735
          %v748 = vpack.c.b16 %v738, %v737
          %v749 = vpack.c.b16 %v740, %v739
          %v750 = vpack.c.b16 %v742, %v741
          %759 = vmatprep.subr.bf16.mxu0 0
          %760 = vmatpush1.bf16.msra.mxu0 %v743
          %761 = vmatprep.subr.bf16.mxu0 0
          %762 = vmatpush1.bf16.msra.mxu0 %v744
          %763 = vmatprep.subr.bf16.mxu0 0
          %764 = vmatpush1.bf16.msra.mxu0 %v745
          %765 = vmatprep.subr.bf16.mxu0 0
          %766 = vmatpush1.bf16.msra.mxu0 %v746
          %767 = vmatprep.subr.bf16.mxu0 0
          %768 = vmatpush1.bf16.msra.mxu0 %v747
          %769 = vmatprep.subr.bf16.mxu0 0
          %770 = vmatpush1.bf16.msra.mxu0 %v748
          %771 = vmatprep.subr.bf16.mxu0 0
          %772 = vmatpush1.bf16.msra.mxu0 %v749
          %773 = vmatprep.subr.bf16.mxu0 0
          %774 = vmatpush1.bf16.msra.mxu0 %v750
          %775 = vmatprep.subr.bf16.mxu0 0
          %776 = vmatpush1.bf16.msra.mxu0 0
          %777 = vmatprep.subr.bf16.mxu0 0
          %778 = vmatpush1.bf16.msra.mxu0 0
          %779 = vmatprep.subr.bf16.mxu0 0
          %780 = vmatpush1.bf16.msra.mxu0 0
          %781 = vmatprep.subr.bf16.mxu0 0
          %782 = vmatpush1.bf16.msra.mxu0 0
          %783 = vmatprep.subr.bf16.mxu0 0
          %784 = vmatpush1.bf16.msra.mxu0 0
          %785 = vmatprep.subr.bf16.mxu0 0
          %786 = vmatpush1.bf16.msra.mxu0 0
          %787 = vmatprep.subr.bf16.mxu0 0
          %788 = vmatpush1.bf16.msra.mxu0 0
          %789 = vmatprep.subr.bf16.mxu0 0
          %790 = vmatpush1.bf16.msra.mxu0 0
          %791 = vmatprep.mubr.bf16.mxu0 0
          %792 = vmatmul.mubr.bf16.gmra.mrb[0].mxu0 %v687
          %v793 = vpop.f32.mrb[0].mxu0
          %v794 = vadd.f32 %v709, %v793
          %v795 = vpop.f32.mrb[0].mxu0
          %v796 = vpop.f32.mrb[0].mxu0
          %v797 = vadd.f32 %v709, %v796
          %v798 = vpop.f32.mrb[0].mxu0
          %799 = vdwg.mxu0
          %v800 = vmax.f32 %v794, 0.0
          %v801 = vmax.f32 %v797, 0.0
          %802 = vst [vmem:[#allocation2] sm:$0xff] %v800
          %803 = vst [vmem:[#allocation2 + $0x8] sm:$0xff] %v801
        $region68: #{_dynamic_net_impl.1} parent=47 // pred_fallthru
          _
        %v804 = vld [vmem:[#allocation2] sm:$0xff]
        %v805 = vld [vmem:[#allocation2 + $0x8] sm:$0xff]
        %v806 = vpack.c.bf16 %v805, %v804
        %v807 = vld [vmem:[#allocation7] sm:$0xf]
        %v808 = vld [vmem:[#allocation7 + $0x4] sm:$0xf]
        %v809 = vld [vmem:[#allocation7 + $0x8] sm:$0xf]
        %v810 = vld [vmem:[#allocation7 + $0xc] sm:$0xf]
        %v811 = vld [vmem:[#allocation7 + $0x10] sm:$0xf]
        %v812 = vld [vmem:[#allocation7 + $0x14] sm:$0xf]
        %v813 = vld [vmem:[#allocation7 + $0x18] sm:$0xf]
        %v814 = vld [vmem:[#allocation7 + $0x1c] sm:$0xf]
        %v815 = vld [vmem:[#allocation7 + $0x20] sm:$0xf]
        %v816 = vld [vmem:[#allocation7 + $0x24] sm:$0xf]
        %v817 = vld [vmem:[#allocation7 + $0x28] sm:$0xf]
        %v818 = vld [vmem:[#allocation7 + $0x2c] sm:$0xf]
        %v819 = vld [vmem:[#allocation7 + $0x30] sm:$0xf]
        %v820 = vld [vmem:[#allocation7 + $0x34] sm:$0xf]
        %v821 = vld [vmem:[#allocation7 + $0x38] sm:$0xf]
        %v822 = vld [vmem:[#allocation7 + $0x3c] sm:$0xf]
        %v823 = vld [vmem:[%s7] sm:$0x1]
        %v825 = vlaneseq
        %v826 = vshrl.u32 %v825, 7
        %v827 = vsub.s32 0, %v826
        %v828 = vrot.slane %v823, %v827
        %v846 = vunpack.c.l.b16 %v807
        %v847 = vunpack.c.l.b16 %v808
        %v848 = vunpack.c.l.b16 %v809
        %v849 = vunpack.c.l.b16 %v810
        %v850 = vunpack.c.l.b16 %v811
        %v851 = vunpack.c.l.b16 %v812
        %v852 = vunpack.c.l.b16 %v813
        %v853 = vunpack.c.l.b16 %v814
        %v854 = vunpack.c.l.b16 %v815
        %v855 = vunpack.c.l.b16 %v816
        %v856 = vunpack.c.l.b16 %v817
        %v857 = vunpack.c.l.b16 %v818
        %v858 = vunpack.c.l.b16 %v819
        %v859 = vunpack.c.l.b16 %v820
        %v860 = vunpack.c.l.b16 %v821
        %v861 = vunpack.c.l.b16 %v822
        %v862 = vpack.c.b16 %v847, %v846
        %v863 = vpack.c.b16 %v849, %v848
        %v864 = vpack.c.b16 %v851, %v850
        %v865 = vpack.c.b16 %v853, %v852
        %v866 = vpack.c.b16 %v855, %v854
        %v867 = vpack.c.b16 %v857, %v856
        %v868 = vpack.c.b16 %v859, %v858
        %v869 = vpack.c.b16 %v861, %v860
        %878 = vmatprep.subr.bf16.mxu0 0
        %879 = vmatpush1.bf16.msra.mxu0 %v862
        %880 = vmatprep.subr.bf16.mxu0 0
        %881 = vmatpush1.bf16.msra.mxu0 %v863
        %882 = vmatprep.subr.bf16.mxu0 0
        %883 = vmatpush1.bf16.msra.mxu0 %v864
        %884 = vmatprep.subr.bf16.mxu0 0
        %885 = vmatpush1.bf16.msra.mxu0 %v865
        %886 = vmatprep.subr.bf16.mxu0 0
        %887 = vmatpush1.bf16.msra.mxu0 %v866
        %888 = vmatprep.subr.bf16.mxu0 0
        %889 = vmatpush1.bf16.msra.mxu0 %v867
        %890 = vmatprep.subr.bf16.mxu0 0
        %891 = vmatpush1.bf16.msra.mxu0 %v868
        %892 = vmatprep.subr.bf16.mxu0 0
        %893 = vmatpush1.bf16.msra.mxu0 %v869
        %894 = vmatprep.subr.bf16.mxu0 0
        %895 = vmatpush1.bf16.msra.mxu0 0
        %896 = vmatprep.subr.bf16.mxu0 0
        %897 = vmatpush1.bf16.msra.mxu0 0
        %898 = vmatprep.subr.bf16.mxu0 0
        %899 = vmatpush1.bf16.msra.mxu0 0
        %900 = vmatprep.subr.bf16.mxu0 0
        %901 = vmatpush1.bf16.msra.mxu0 0
        %902 = vmatprep.subr.bf16.mxu0 0
        %903 = vmatpush1.bf16.msra.mxu0 0
        %904 = vmatprep.subr.bf16.mxu0 0
        %905 = vmatpush1.bf16.msra.mxu0 0
        %906 = vmatprep.subr.bf16.mxu0 0
        %907 = vmatpush1.bf16.msra.mxu0 0
        %908 = vmatprep.subr.bf16.mxu0 0
        %909 = vmatpush1.bf16.msra.mxu0 0
        %910 = vmatprep.mubr.bf16.mxu0 0
        %911 = vmatmul.mubr.bf16.gmra.mrb[0].mxu0 %v806
        %v912 = vpop.f32.mrb[0].mxu0
        %v913 = vadd.f32 %v828, %v912
        %v914 = vpop.f32.mrb[0].mxu0
        %v915 = vpop.f32.mrb[0].mxu0
        %v916 = vadd.f32 %v828, %v915
        %v917 = vpop.f32.mrb[0].mxu0
        %918 = vdwg.mxu0
        %919 = vst [vmem:[%s312] sm:$0xff] %v913
        %920 = vst [vmem:[%s312 + $0x8] sm:$0xff] %v916
        %s921 = smul.u32 2, %s22
        %p922 = scmp.lt.s32.totalorder %s921, 3
        %s923 = scalar_select %p922, %s921, 3
        %s924 = smul.addr %s923, 8
        %s925 = scalar_lea.vmem %s8, %s924
        // Predicated region
        $region69: #{_dynamic_net_impl.1} parent=47 // pred_check
          %p926 = pneg %p192
        $region70: #{_dynamic_net_impl.1} parent=47 // pred_check_branch
          %928 = sbr.rel (%p926) target = $region72
        $region71: #{_dynamic_net_impl.1} parent=47 // pred_region
          %s929 = smul.u32 2, %s22
        $region72: #{_dynamic_net_impl.1} parent=47 // pred_fallthru
          _
      $region48: #{_dynamic_net_impl.1} parent=5 // pred_fallthru
        _
      %p930 = scmp.le.s32.totalorder 2, %s17
      // Predicated region
      $region73: #{_dynamic_net_impl.1} parent=5 // pred_check
        %p931 = pneg %p930
      $region74: #{_dynamic_net_impl.1} parent=5 // pred_check_branch
        %933 = sbr.rel (%p931) target = $region76
      $region75: #{_dynamic_net_impl.1} parent=5 // pred_region
        %s934 = ssub.s32 %s17, 2
        // Predicated region
        $region77: #{_dynamic_net_impl.1} parent=75 // pred_check
          %p935 = pneg %p198
        $region78: #{_dynamic_net_impl.1} parent=75 // pred_check_branch
          %937 = sbr.rel (%p935) target = $region80
        $region79: #{_dynamic_net_impl.1} parent=75 // pred_region
          %s938 = smul.u32 2, %s23
          %p939 = scmp.lt.s32.totalorder %s938, 3
          %s940 = scalar_select %p939, %s938, 3
          %s941 = smul.addr %s940, 8
          %s942 = scalar_lea.vmem %s8, %s941
        $region80: #{_dynamic_net_impl.1} parent=75 // pred_fallthru
          _
      $region76: #{_dynamic_net_impl.1} parent=5 // pred_fallthru
        _
    $region6: #{_dynamic_net_impl.1} parent=1 // loop_footer
      %s21 = sadd.s32 1, %s17
    $region7: #{_dynamic_net_impl.1} parent=1 // loop_footer_branch
      %16 = sbr.rel target = $region3
    $region8: #{_dynamic_net_impl.1} parent=1 // loop_exit
      _
    %943 = vsyncpa [#allocation6], 1
    %s944 = scalar_lea.sflag [#allocation6], 1
    %945 = vsyncpa %s944, 1
    %946 = vsyncpa [#allocation8], 1

// kernel: _dynamic_net_impl.1
$region0: #{_dynamic_net_impl.1}
  #allocation0 [shape = 'u32[]', space=smem, size = 0x4, offset = 0x4, fixed_abs, tag = 'smem constant byte address 0x4 - core index']
  #allocation1 [shape = 'u32[144,128]{1,0:T(1,128)}', space=vmem, size = 0x12000, scoped, tag = 'internal scratch']
  #allocation2 [shape = 'f32[16,128]{1,0:T(8,128)}', space=vmem, size = 0x2000, scoped, tag = 'scratch operand']
  #allocation3 [shape = 's32[1]{0}', space=sflag, size = 0x4, scoped, tag = 'scoped memory for _dynamic_net_impl.1']
  #allocation4 [shape = 's32[1]{0:T(128)S(6)}', space=smem, size = 0x200, scoped, tag = 'prefetched SMEM operand 0']
  %s0 = inlined_call_operand.<no memory space> [shape: s32[1], index: 0, kind: input, shape index: {}]
  %s1 = inlined_call_operand.vmem [shape: f32[32,128], index: 1, kind: input, shape index: {}]
  %s2 = inlined_call_operand.vmem [shape: bf16[128,128], index: 2, kind: input, shape index: {}]
  %s3 = inlined_call_operand.vmem [shape: f32[1,128], index: 3, kind: input, shape index: {}]
  %s4 = inlined_call_operand.hbm [shape: bf16[128,128], index: 4, kind: input, shape index: {}]
  %s5 = inlined_call_operand.vmem [shape: f32[1,128], index: 5, kind: input, shape index: {}]
  %s6 = inlined_call_operand.hbm [shape: bf16[128,128], index: 6, kind: input, shape index: {}]
  %s7 = inlined_call_operand.vmem [shape: f32[1,128], index: 7, kind: input, shape index: {}]
  %s8 = inlined_call_operand.vmem [shape: f32[32,128], index: 8, kind: output, shape index: {}]
  %s9 = sld [smem:[#allocation0]]
  $region81: #{_dynamic_net_impl.1} parent=0
    _
  %s11 = ssub.s32 1, %s9
  %s12 = scalar_select 0, %s11, %s9
  %13 = sst [smem:[#allocation4]] %s0
  $region1: #{_dynamic_net_impl.1} parent=0
    #allocation5 [shape = 'u8[32768]{0}', space=vmem, size = 0x8000, scoped, tag = 'input window, operand 4, single buffered']
    #allocation6 [shape = 's32[2]{0}', space=sflag, size = 0x8, scoped, tag = 'scoped memory for _dynamic_net_impl.1']
    #allocation7 [shape = 'u8[32768]{0}', space=vmem, size = 0x8000, scoped, tag = 'input window, operand 6, single buffered']
    #allocation8 [shape = 's32[1]{0}', space=sflag, size = 0x4, scoped, tag = 'scoped memory for _dynamic_net_impl.1']
    %14 = vsyncpa [#allocation6], 0
    %15 = vsyncpa [#allocation8], 0
    loop: start=0, step=1, limit=4
    $region2: #{_dynamic_net_impl.1} parent=1 // loop_pre_header
      _
    $region3: #{_dynamic_net_impl.1} parent=1 // loop_header
      %s17 = sphi 0, %s21
      %p18 = scmp.ge.s32.totalorder %s17, 4
      %s27 = sphi 0, %s29
      %s30 = sphi 0, %s27
      %s31 = sphi 0, %s30
      %s47 = sphi 0, %s31
      %s51 = sphi 0, %s51
      %s53 = sphi 0, %s51
      %s54 = sphi 0, %s53
      %s68 = sphi 0, %s54
      %s72 = sphi 0, %s72
      %s74 = sphi 0, %s72
      %s75 = sphi 0, %s74
      %s89 = sphi 0, %s75
      %s93 = sphi 0, %s93
      %s95 = sphi 0, %s93
      %s96 = sphi 0, %s95
      %s110 = sphi 0, %s96
      %s114 = sphi 0, %s114
      %s116 = sphi 0, %s114
      %s117 = sphi 0, %s116
      %s131 = sphi 0, %s117
      %s135 = sphi 0, %s135
      %s137 = sphi 0, %s135
      %s138 = sphi 0, %s137
      %s152 = sphi 0, %s138
      %s156 = sphi 0, %s156
      %s158 = sphi 0, %s156
      %s159 = sphi 0, %s158
      %s173 = sphi 0, %s159
      %s179 = sphi 0, %s181
      %s182 = sphi 0, %s179
      %s183 = sphi 0, %s182
      %s199 = sphi 0, %s183
    $region4: #{_dynamic_net_impl.1} parent=1 // loop_header_branch
      %20 = sbr.rel (%p18) target = $region8
    $region5: #{_dynamic_net_impl.1} parent=1 // loop_body
      %s22 = ssub.s32 %s17, 1
      %s23 = ssub.s32 %s17, 2
      %s24 = sadd.s32 %s17, 1
      %s25 = ssub.s32 %s17, %s24
      %p26 = scmp.eq.s32.totalorder %s25, 0
      %s28 = sadd.s32 %s27, 1
      %s29 = scalar_select %p26, %s27, %s28
      %p32 = pneg %p26
      %p33 = scmp.eq.s32.totalorder %s17, 1
      %p34 = por %p32, %p33
      %p35 = scmp.ne.s32.totalorder %s27, %s30
      %p36 = scmp.eq.s32.totalorder %s17, 0
      %p37 = por %p35, %p36
      %p38 = scmp.ne.s32.totalorder %s27, %s30
      %p39 = scmp.eq.s32.totalorder %s22, 1
      %p40 = por %p38, %p39
      %p41 = scmp.ne.s32.totalorder %s30, %s31
      %p42 = scmp.eq.s32.totalorder %s22, 0
      %p43 = por %p41, %p42
      %p44 = scmp.ne.s32.totalorder %s30, %s31
      %p45 = scmp.eq.s32.totalorder %s23, 1
      %p46 = por %p44, %p45
      %p48 = scmp.ne.s32.totalorder %s31, %s47
      %p49 = scmp.eq.s32.totalorder %s23, 0
      %p50 = por %p48, %p49
      %s52 = sadd.s32 %s51, 1
      %p55 = scmp.eq.s32.totalorder %s17, 1
      %p56 = scmp.ne.s32.totalorder %s51, %s53
      %p57 = scmp.eq.s32.totalorder %s17, 0
      %p58 = por %p56, %p57
      %p59 = scmp.ne.s32.totalorder %s51, %s53
      %p60 = scmp.eq.s32.totalorder %s22, 1
      %p61 = por %p59, %p60
      %p62 = scmp.ne.s32.totalorder %s53, %s54
      %p63 = scmp.eq.s32.totalorder %s22, 0
      %p64 = por %p62, %p63
      %p65 = scmp.ne.s32.totalorder %s53, %s54
      %p66 = scmp.eq.s32.totalorder %s23, 1
      %p67 = por %p65, %p66
      %p69 = scmp.ne.s32.totalorder %s54, %s68
      %p70 = scmp.eq.s32.totalorder %s23, 0
      %p71 = por %p69, %p70
      %s73 = sadd.s32 %s72, 1
      %p76 = scmp.eq.s32.totalorder %s17, 1
      %p77 = scmp.ne.s32.totalorder %s72, %s74
      %p78 = scmp.eq.s32.totalorder %s17, 0
      %p79 = por %p77, %p78
      %p80 = scmp.ne.s32.totalorder %s72, %s74
      %p81 = scmp.eq.s32.totalorder %s22, 1
      %p82 = por %p80, %p81
      %p83 = scmp.ne.s32.totalorder %s74, %s75
      %p84 = scmp.eq.s32.totalorder %s22, 0
      %p85 = por %p83, %p84
      %p86 = scmp.ne.s32.totalorder %s74, %s75
      %p87 = scmp.eq.s32.totalorder %s23, 1
      %p88 = por %p86, %p87
      %p90 = scmp.ne.s32.totalorder %s75, %s89
      %p91 = scmp.eq.s32.totalorder %s23, 0
      %p92 = por %p90, %p91
      %s94 = sadd.s32 %s93, 1
      %p97 = scmp.eq.s32.totalorder %s17, 1
      %p98 = scmp.ne.s32.totalorder %s93, %s95
      %p99 = scmp.eq.s32.totalorder %s17, 0
      %p100 = por %p98, %p99
      %p101 = scmp.ne.s32.totalorder %s93, %s95
      %p102 = scmp.eq.s32.totalorder %s22, 1
      %p103 = por %p101, %p102
      %p104 = scmp.ne.s32.totalorder %s95, %s96
      %p105 = scmp.eq.s32.totalorder %s22, 0
      %p106 = por %p104, %p105
      %p107 = scmp.ne.s32.totalorder %s95, %s96
      %p108 = scmp.eq.s32.totalorder %s23, 1
      %p109 = por %p107, %p108
      %p111 = scmp.ne.s32.totalorder %s96, %s110
      %p112 = scmp.eq.s32.totalorder %s23, 0
      %p113 = por %p111, %p112
      %s115 = sadd.s32 %s114, 1
      %p118 = scmp.eq.s32.totalorder %s17, 1
      %p119 = scmp.ne.s32.totalorder %s114, %s116
      %p120 = scmp.eq.s32.totalorder %s17, 0
      %p121 = por %p119, %p120
      %p122 = scmp.ne.s32.totalorder %s114, %s116
      %p123 = scmp.eq.s32.totalorder %s22, 1
      %p124 = por %p122, %p123
      %p125 = scmp.ne.s32.totalorder %s116, %s117
      %p126 = scmp.eq.s32.totalorder %s22, 0
      %p127 = por %p125, %p126
      %p128 = scmp.ne.s32.totalorder %s116, %s117
      %p129 = scmp.eq.s32.totalorder %s23, 1
      %p130 = por %p128, %p129
      %p132 = scmp.ne.s32.totalorder %s117, %s131
      %p133 = scmp.eq.s32.totalorder %s23, 0
      %p134 = por %p132, %p133
      %s136 = sadd.s32 %s135, 1
      %p139 = scmp.eq.s32.totalorder %s17, 1
      %p140 = scmp.ne.s32.totalorder %s135, %s137
      %p141 = scmp.eq.s32.totalorder %s17, 0
      %p142 = por %p140, %p141
      %p143 = scmp.ne.s32.totalorder %s135, %s137
      %p144 = scmp.eq.s32.totalorder %s22, 1
      %p145 = por %p143, %p144
      %p146 = scmp.ne.s32.totalorder %s137, %s138
      %p147 = scmp.eq.s32.totalorder %s22, 0
      %p148 = por %p146, %p147
      %p149 = scmp.ne.s32.totalorder %s137, %s138
      %p150 = scmp.eq.s32.totalorder %s23, 1
      %p151 = por %p149, %p150
      %p153 = scmp.ne.s32.totalorder %s138, %s152
      %p154 = scmp.eq.s32.totalorder %s23, 0
      %p155 = por %p153, %p154
      %s157 = sadd.s32 %s156, 1
      %p160 = scmp.eq.s32.totalorder %s17, 1
      %p161 = scmp.ne.s32.totalorder %s156, %s158
      %p162 = scmp.eq.s32.totalorder %s17, 0
      %p163 = por %p161, %p162
      %p164 = scmp.ne.s32.totalorder %s156, %s158
      %p165 = scmp.eq.s32.totalorder %s22, 1
      %p166 = por %p164, %p165
      %p167 = scmp.ne.s32.totalorder %s158, %s159
      %p168 = scmp.eq.s32.totalorder %s22, 0
      %p169 = por %p167, %p168
      %p170 = scmp.ne.s32.totalorder %s158, %s159
      %p171 = scmp.eq.s32.totalorder %s23, 1
      %p172 = por %p170, %p171
      %p174 = scmp.ne.s32.totalorder %s159, %s173
      %p175 = scmp.eq.s32.totalorder %s23, 0
      %p176 = por %p174, %p175
      %s177 = ssub.s32 %s17, %s24
      %p178 = scmp.eq.s32.totalorder %s177, 0
      %s180 = sadd.s32 %s179, 1
      %s181 = scalar_select %p178, %s179, %s180
      %p184 = pneg %p178
      %p185 = scmp.eq.s32.totalorder %s17, 1
      %p186 = por %p184, %p185
      %p187 = scmp.ne.s32.totalorder %s179, %s182
      %p188 = scmp.eq.s32.totalorder %s17, 0
      %p189 = por %p187, %p188
      %p190 = scmp.ne.s32.totalorder %s179, %s182
      %p191 = scmp.eq.s32.totalorder %s22, 1
      %p192 = por %p190, %p191
      %p193 = scmp.ne.s32.totalorder %s182, %s183
      %p194 = scmp.eq.s32.totalorder %s22, 0
      %p195 = por %p193, %p194
      %p196 = scmp.ne.s32.totalorder %s182, %s183
      %p197 = scmp.eq.s32.totalorder %s23, 1
      %p198 = por %p196, %p197
      %p200 = scmp.ne.s32.totalorder %s183, %s199
      %p201 = scmp.eq.s32.totalorder %s23, 0
      %p202 = por %p200, %p201
      %p203 = scmp.le.s32.totalorder 1, %s17
      %p204 = scmp.lt.s32.totalorder %s17, 3
      %p205 = pnand %p203, %p204
      %p206 = pneg %p205
      // Predicated region
      $region9: #{_dynamic_net_impl.1} parent=5 // pred_check
        _
      $region10: #{_dynamic_net_impl.1} parent=5 // pred_check_branch
        %208 = sbr.rel (%p205) target = $region12
      $region11: #{_dynamic_net_impl.1} parent=5 // pred_region
        %s209 = ssub.s32 %s17, 1
        // Predicated region
        $region13: #{_dynamic_net_impl.1} parent=11 // pred_check
          %p210 = pneg %p64
        $region14: #{_dynamic_net_impl.1} parent=11 // pred_check_branch
          %212 = sbr.rel (%p210) target = $region16
        $region15: #{_dynamic_net_impl.1} parent=11 // pred_region
          _
        $region16: #{_dynamic_net_impl.1} parent=11 // pred_fallthru
          _
        // Predicated region
        $region17: #{_dynamic_net_impl.1} parent=11 // pred_check
          %p213 = pneg %p85
        $region18: #{_dynamic_net_impl.1} parent=11 // pred_check_branch
          %215 = sbr.rel (%p213) target = $region20
        $region19: #{_dynamic_net_impl.1} parent=11 // pred_region
          _
        $region20: #{_dynamic_net_impl.1} parent=11 // pred_fallthru
          _
        // Predicated region
        $region21: #{_dynamic_net_impl.1} parent=11 // pred_check
          %p216 = pneg %p106
        $region22: #{_dynamic_net_impl.1} parent=11 // pred_check_branch
          %218 = sbr.rel (%p216) target = $region24
        $region23: #{_dynamic_net_impl.1} parent=11 // pred_region
          %s220 = ssub.s32 1024, 1024
          %221 = vsyncadd [#allocation6], %s220
          %s222 = sshll.u32 [#allocation5], 4
          %s223 = int_to_ptr.vmem [resolvable:$true] %s222
          %228 = dma.hbm_to_vmem [thread:$0]  %s4, 1024, %s223, [#allocation6], 64, 64, 4
        $region24: #{_dynamic_net_impl.1} parent=11 // pred_fallthru
          _
        // Predicated region
        $region25: #{_dynamic_net_impl.1} parent=11 // pred_check
          %p229 = pneg %p127
        $region26: #{_dynamic_net_impl.1} parent=11 // pred_check_branch
          %231 = sbr.rel (%p229) target = $region28
        $region27: #{_dynamic_net_impl.1} parent=11 // pred_region
          _
        $region28: #{_dynamic_net_impl.1} parent=11 // pred_fallthru
          _
        // Predicated region
        $region29: #{_dynamic_net_impl.1} parent=11 // pred_check
          %p232 = pneg %p148
        $region30: #{_dynamic_net_impl.1} parent=11 // pred_check_branch
          %234 = sbr.rel (%p232) target = $region32
        $region31: #{_dynamic_net_impl.1} parent=11 // pred_region
          %s236 = ssub.s32 1024, 1024
          %237 = vsyncadd [#allocation8], %s236
          %s238 = sshll.u32 [#allocation7], 4
          %s239 = int_to_ptr.vmem [resolvable:$true] %s238
          %244 = dma.hbm_to_vmem [thread:$0]  %s6, 1024, %s239, [#allocation8], 64, 64, 4
        $region32: #{_dynamic_net_impl.1} parent=11 // pred_fallthru
          _
        // Predicated region
        $region33: #{_dynamic_net_impl.1} parent=11 // pred_check
          %p245 = pneg %p169
        $region34: #{_dynamic_net_impl.1} parent=11 // pred_check_branch
          %247 = sbr.rel (%p245) target = $region36
        $region35: #{_dynamic_net_impl.1} parent=11 // pred_region
          _
        $region36: #{_dynamic_net_impl.1} parent=11 // pred_fallthru
          _
      $region12: #{_dynamic_net_impl.1} parent=5 // pred_fallthru
        _
      %p248 = scmp.lt.s32.totalorder %s17, 2
      // Predicated region
      $region37: #{_dynamic_net_impl.1} parent=5 // pred_check
        %p249 = pneg %p248
      $region38: #{_dynamic_net_impl.1} parent=5 // pred_check_branch
        %251 = sbr.rel (%p249) target = $region40
      $region39: #{_dynamic_net_impl.1} parent=5 // pred_region
        // Predicated region
        $region41: #{_dynamic_net_impl.1} parent=39 // pred_check
          %p252 = pneg %p37
        $region42: #{_dynamic_net_impl.1} parent=39 // pred_check_branch
          %254 = sbr.rel (%p252) target = $region44
        $region43: #{_dynamic_net_impl.1} parent=39 // pred_region
          %s255 = smul.u32 2, %s17
          %p256 = scmp.lt.s32.totalorder %s255, 3
          %s257 = scalar_select %p256, %s255, 3
          %s258 = smul.addr %s257, 8
          %s259 = scalar_lea.vmem %s1, %s258
          %s260 = smul.u32 2, %s17
        $region44: #{_dynamic_net_impl.1} parent=39 // pred_fallthru
          _
      $region40: #{_dynamic_net_impl.1} parent=5 // pred_fallthru
        _
      %p261 = scmp.le.s32.totalorder 1, %s17
      %p262 = scmp.lt.s32.totalorder %s17, 3
      %p263 = pnand %p261, %p262
      %p264 = pneg %p263
      // Predicated region
      $region45: #{_dynamic_net_impl.1} parent=5 // pred_check
        _
      $region46: #{_dynamic_net_impl.1} parent=5 // pred_check_branch
        %266 = sbr.rel (%p263) target = $region48
      $region47: #{_dynamic_net_impl.1} parent=5 // pred_region
        %s267 = ssub.s32 %s17, 1
        // Predicated region
        $region49: #{_dynamic_net_impl.1} parent=47 // pred_check
          %p268 = pneg %p106
        $region50: #{_dynamic_net_impl.1} parent=47 // pred_check_branch
          %270 = sbr.rel (%p268) target = $region52
        $region51: #{_dynamic_net_impl.1} parent=47 // pred_region
          %271 = dma.done [#allocation6], 1024
        $region52: #{_dynamic_net_impl.1} parent=47 // pred_fallthru
          _
        // Predicated region
        $region53: #{_dynamic_net_impl.1} parent=47 // pred_check
          %p272 = pneg %p148
        $region54: #{_dynamic_net_impl.1} parent=47 // pred_check_branch
          %274 = sbr.rel (%p272) target = $region56
        $region55: #{_dynamic_net_impl.1} parent=47 // pred_region
          %275 = dma.done [#allocation8], 1024
        $region56: #{_dynamic_net_impl.1} parent=47 // pred_fallthru
          _
        %s276 = smul.u32 2, %s22
        %p277 = scmp.lt.s32.totalorder %s276, 3
        %s278 = scalar_select %p277, %s276, 3
        %s279 = smul.addr %s278, 8
        %s280 = scalar_lea.vmem %s1, %s279
        %p281 = pneg %p43
        %p282 = pneg %p40
        %p283 = pneg %p64
        %p284 = pneg %p61
        %p285 = pneg %p85
        %p286 = pneg %p82
        %p287 = pneg %p106
        %p288 = pneg %p103
        %p289 = pneg %p127
        %p290 = pneg %p124
        %p291 = pneg %p148
        %p292 = pneg %p145
        %p293 = pneg %p169
        %p294 = pneg %p166
        %p295 = pneg %p195
        %p296 = pneg %p192
        %s297 = smul.u32 2, %s22
        %p298 = scmp.lt.s32.totalorder %s297, 3
        %s299 = scalar_select %p298, %s297, 3
        %s300 = smul.addr %s299, 8
        %s301 = scalar_lea.vmem %s8, %s300
        %s302 = smul.u32 2, %s22
        %p303 = scmp.lt.s32.totalorder %s302, 3
        %s304 = scalar_select %p303, %s302, 3
        %s305 = smul.addr %s304, 8
        %s306 = scalar_lea.vmem %s1, %s305
        %s307 = smul.u32 2, %s22
        %s308 = smul.u32 2, %s22
        %p309 = scmp.lt.s32.totalorder %s308, 3
        %s310 = scalar_select %p309, %s308, 3
        %s311 = smul.addr %s310, 8
        %s312 = scalar_lea.vmem %s8, %s311
        %s313 = smul.u32 2, %s22
        %s315 = sld [smem:[#allocation4]]
        %v316 = vld [vmem:[%s306] sm:$0xff]
        %v317 = vld [vmem:[%s306 + $0x8] sm:$0xff]
        %v318 = vpack.c.bf16 %v317, %v316
        %v319 = vld [vmem:[%s2] sm:$0xf]
        %v320 = vld [vmem:[%s2 + $0x4] sm:$0xf]
        %v321 = vld [vmem:[%s2 + $0x8] sm:$0xf]
        %v322 = vld [vmem:[%s2 + $0xc] sm:$0xf]
        %v323 = vld [vmem:[%s2 + $0x10] sm:$0xf]
        %v324 = vld [vmem:[%s2 + $0x14] sm:$0xf]
        %v325 = vld [vmem:[%s2 + $0x18] sm:$0xf]
        %v326 = vld [vmem:[%s2 + $0x1c] sm:$0xf]
        %v327 = vld [vmem:[%s2 + $0x20] sm:$0xf]
        %v328 = vld [vmem:[%s2 + $0x24] sm:$0xf]
        %v329 = vld [vmem:[%s2 + $0x28] sm:$0xf]
        %v330 = vld [vmem:[%s2 + $0x2c] sm:$0xf]
        %v331 = vld [vmem:[%s2 + $0x30] sm:$0xf]
        %v332 = vld [vmem:[%s2 + $0x34] sm:$0xf]
        %v333 = vld [vmem:[%s2 + $0x38] sm:$0xf]
        %v334 = vld [vmem:[%s2 + $0x3c] sm:$0xf]
        %v335 = vld [vmem:[%s3] sm:$0x1]
        %v337 = vlaneseq
        %v338 = vshrl.u32 %v337, 7
        %v339 = vsub.s32 0, %v338
        %v340 = vrot.slane %v335, %v339
        %v358 = vunpack.c.l.b16 %v319
        %v359 = vunpack.c.l.b16 %v320
        %v360 = vunpack.c.l.b16 %v321
        %v361 = vunpack.c.l.b16 %v322
        %v362 = vunpack.c.l.b16 %v323
        %v363 = vunpack.c.l.b16 %v324
        %v364 = vunpack.c.l.b16 %v325
        %v365 = vunpack.c.l.b16 %v326
        %v366 = vunpack.c.l.b16 %v327
        %v367 = vunpack.c.l.b16 %v328
        %v368 = vunpack.c.l.b16 %v329
        %v369 = vunpack.c.l.b16 %v330
        %v370 = vunpack.c.l.b16 %v331
        %v371 = vunpack.c.l.b16 %v332
        %v372 = vunpack.c.l.b16 %v333
        %v373 = vunpack.c.l.b16 %v334
        %v374 = vpack.c.b16 %v359, %v358
        %v375 = vpack.c.b16 %v361, %v360
        %v376 = vpack.c.b16 %v363, %v362
        %v377 = vpack.c.b16 %v365, %v364
        %v378 = vpack.c.b16 %v367, %v366
        %v379 = vpack.c.b16 %v369, %v368
        %v380 = vpack.c.b16 %v371, %v370
        %v381 = vpack.c.b16 %v373, %v372
        %390 = vmatprep.subr.bf16.mxu0 0
        %391 = vmatpush1.bf16.msra.mxu0 %v374
        %392 = vmatprep.subr.bf16.mxu0 0
        %393 = vmatpush1.bf16.msra.mxu0 %v375
        %394 = vmatprep.subr.bf16.mxu0 0
        %395 = vmatpush1.bf16.msra.mxu0 %v376
        %396 = vmatprep.subr.bf16.mxu0 0
        %397 = vmatpush1.bf16.msra.mxu0 %v377
        %398 = vmatprep.subr.bf16.mxu0 0
        %399 = vmatpush1.bf16.msra.mxu0 %v378
        %400 = vmatprep.subr.bf16.mxu0 0
        %401 = vmatpush1.bf16.msra.mxu0 %v379
        %402 = vmatprep.subr.bf16.mxu0 0
        %403 = vmatpush1.bf16.msra.mxu0 %v380
        %404 = vmatprep.subr.bf16.mxu0 0
        %405 = vmatpush1.bf16.msra.mxu0 %v381
        %406 = vmatprep.subr.bf16.mxu0 0
        %407 = vmatpush1.bf16.msra.mxu0 0
        %408 = vmatprep.subr.bf16.mxu0 0
        %409 = vmatpush1.bf16.msra.mxu0 0
        %410 = vmatprep.subr.bf16.mxu0 0
        %411 = vmatpush1.bf16.msra.mxu0 0
        %412 = vmatprep.subr.bf16.mxu0 0
        %413 = vmatpush1.bf16.msra.mxu0 0
        %414 = vmatprep.subr.bf16.mxu0 0
        %415 = vmatpush1.bf16.msra.mxu0 0
        %416 = vmatprep.subr.bf16.mxu0 0
        %417 = vmatpush1.bf16.msra.mxu0 0
        %418 = vmatprep.subr.bf16.mxu0 0
        %419 = vmatpush1.bf16.msra.mxu0 0
        %420 = vmatprep.subr.bf16.mxu0 0
        %421 = vmatpush1.bf16.msra.mxu0 0
        %422 = vmatprep.mubr.bf16.mxu0 0
        %423 = vmatmul.mubr.bf16.gmra.mrb[0].mxu0 %v318
        %v424 = vpop.f32.mrb[0].mxu0
        %v425 = vadd.f32 %v340, %v424
        %v426 = vpop.f32.mrb[0].mxu0
        %v427 = vpop.f32.mrb[0].mxu0
        %v428 = vadd.f32 %v340, %v427
        %v429 = vpop.f32.mrb[0].mxu0
        %430 = vdwg.mxu0
        %v431 = vmax.f32 %v425, 0.0
        %v432 = vmax.f32 %v428, 0.0
        %433 = vst [vmem:[#allocation2] sm:$0xff] %v431
        %434 = vst [vmem:[#allocation2 + $0x8] sm:$0xff] %v432
        %p435 = scmp.gt.s32.totalorder %s315, 0
        // Predicated region
        $region57: #{_dynamic_net_impl.1} parent=47 // pred_check
          %p436 = pneg %p435
        $region58: #{_dynamic_net_impl.1} parent=47 // pred_check_branch
          %438 = sbr.rel (%p436) target = $region60
        $region59: #{_dynamic_net_impl.1} parent=47 // pred_region
          %v439 = vld [vmem:[#allocation2] sm:$0xff]
          %v440 = vld [vmem:[#allocation2 + $0x8] sm:$0xff]
          %v441 = vpack.c.bf16 %v440, %v439
          %v442 = vld [vmem:[#allocation5] sm:$0xf]
          %v443 = vld [vmem:[#allocation5 + $0x4] sm:$0xf]
          %v444 = vld [vmem:[#allocation5 + $0x8] sm:$0xf]
          %v445 = vld [vmem:[#allocation5 + $0xc] sm:$0xf]
          %v446 = vld [vmem:[#allocation5 + $0x10] sm:$0xf]
          %v447 = vld [vmem:[#allocation5 + $0x14] sm:$0xf]
          %v448 = vld [vmem:[#allocation5 + $0x18] sm:$0xf]
          %v449 = vld [vmem:[#allocation5 + $0x1c] sm:$0xf]
          %v450 = vld [vmem:[#allocation5 + $0x20] sm:$0xf]
          %v451 = vld [vmem:[#allocation5 + $0x24] sm:$0xf]
          %v452 = vld [vmem:[#allocation5 + $0x28] sm:$0xf]
          %v453 = vld [vmem:[#allocation5 + $0x2c] sm:$0xf]
          %v454 = vld [vmem:[#allocation5 + $0x30] sm:$0xf]
          %v455 = vld [vmem:[#allocation5 + $0x34] sm:$0xf]
          %v456 = vld [vmem:[#allocation5 + $0x38] sm:$0xf]
          %v457 = vld [vmem:[#allocation5 + $0x3c] sm:$0xf]
          %v458 = vld [vmem:[%s5] sm:$0x1]
          %v460 = vlaneseq
          %v461 = vshrl.u32 %v460, 7
          %v462 = vsub.s32 0, %v461
          %v463 = vrot.slane %v458, %v462
          %v481 = vunpack.c.l.b16 %v442
          %v482 = vunpack.c.l.b16 %v443
          %v483 = vunpack.c.l.b16 %v444
          %v484 = vunpack.c.l.b16 %v445
          %v485 = vunpack.c.l.b16 %v446
          %v486 = vunpack.c.l.b16 %v447
          %v487 = vunpack.c.l.b16 %v448
          %v488 = vunpack.c.l.b16 %v449
          %v489 = vunpack.c.l.b16 %v450
          %v490 = vunpack.c.l.b16 %v451
          %v491 = vunpack.c.l.b16 %v452
          %v492 = vunpack.c.l.b16 %v453
          %v493 = vunpack.c.l.b16 %v454
          %v494 = vunpack.c.l.b16 %v455
          %v495 = vunpack.c.l.b16 %v456
          %v496 = vunpack.c.l.b16 %v457
          %v497 = vpack.c.b16 %v482, %v481
          %v498 = vpack.c.b16 %v484, %v483
          %v499 = vpack.c.b16 %v486, %v485
          %v500 = vpack.c.b16 %v488, %v487
          %v501 = vpack.c.b16 %v490, %v489
          %v502 = vpack.c.b16 %v492, %v491
          %v503 = vpack.c.b16 %v494, %v493
          %v504 = vpack.c.b16 %v496, %v495
          %513 = vmatprep.subr.bf16.mxu0 0
          %514 = vmatpush1.bf16.msra.mxu0 %v497
          %515 = vmatprep.subr.bf16.mxu0 0
          %516 = vmatpush1.bf16.msra.mxu0 %v498
          %517 = vmatprep.subr.bf16.mxu0 0
          %518 = vmatpush1.bf16.msra.mxu0 %v499
          %519 = vmatprep.subr.bf16.mxu0 0
          %520 = vmatpush1.bf16.msra.mxu0 %v500
          %521 = vmatprep.subr.bf16.mxu0 0
          %522 = vmatpush1.bf16.msra.mxu0 %v501
          %523 = vmatprep.subr.bf16.mxu0 0
          %524 = vmatpush1.bf16.msra.mxu0 %v502
          %525 = vmatprep.subr.bf16.mxu0 0
          %526 = vmatpush1.bf16.msra.mxu0 %v503
          %527 = vmatprep.subr.bf16.mxu0 0
          %528 = vmatpush1.bf16.msra.mxu0 %v504
          %529 = vmatprep.subr.bf16.mxu0 0
          %530 = vmatpush1.bf16.msra.mxu0 0
          %531 = vmatprep.subr.bf16.mxu0 0
          %532 = vmatpush1.bf16.msra.mxu0 0
          %533 = vmatprep.subr.bf16.mxu0 0
          %534 = vmatpush1.bf16.msra.mxu0 0
          %535 = vmatprep.subr.bf16.mxu0 0
          %536 = vmatpush1.bf16.msra.mxu0 0
          %537 = vmatprep.subr.bf16.mxu0 0
          %538 = vmatpush1.bf16.msra.mxu0 0
          %539 = vmatprep.subr.bf16.mxu0 0
          %540 = vmatpush1.bf16.msra.mxu0 0
          %541 = vmatprep.subr.bf16.mxu0 0
          %542 = vmatpush1.bf16.msra.mxu0 0
          %543 = vmatprep.subr.bf16.mxu0 0
          %544 = vmatpush1.bf16.msra.mxu0 0
          %545 = vmatprep.mubr.bf16.mxu0 0
          %546 = vmatmul.mubr.bf16.gmra.mrb[0].mxu0 %v441
          %v547 = vpop.f32.mrb[0].mxu0
          %v548 = vadd.f32 %v463, %v547
          %v549 = vpop.f32.mrb[0].mxu0
          %v550 = vpop.f32.mrb[0].mxu0
          %v551 = vadd.f32 %v463, %v550
          %v552 = vpop.f32.mrb[0].mxu0
          %553 = vdwg.mxu0
          %v554 = vmax.f32 %v548, 0.0
          %v555 = vmax.f32 %v551, 0.0
          %556 = vst [vmem:[#allocation2] sm:$0xff] %v554
          %557 = vst [vmem:[#allocation2 + $0x8] sm:$0xff] %v555
        $region60: #{_dynamic_net_impl.1} parent=47 // pred_fallthru
          _
        %p558 = scmp.gt.s32.totalorder %s315, 1
        // Predicated region
        $region61: #{_dynamic_net_impl.1} parent=47 // pred_check
          %p559 = pneg %p558
        $region62: #{_dynamic_net_impl.1} parent=47 // pred_check_branch
          %561 = sbr.rel (%p559) target = $region64
        $region63: #{_dynamic_net_impl.1} parent=47 // pred_region
          %v562 = vld [vmem:[#allocation2] sm:$0xff]
          %v563 = vld [vmem:[#allocation2 + $0x8] sm:$0xff]
          %v564 = vpack.c.bf16 %v563, %v562
          %v565 = vld [vmem:[#allocation5] sm:$0xf]
          %v566 = vld [vmem:[#allocation5 + $0x4] sm:$0xf]
          %v567 = vld [vmem:[#allocation5 + $0x8] sm:$0xf]
          %v568 = vld [vmem:[#allocation5 + $0xc] sm:$0xf]
          %v569 = vld [vmem:[#allocation5 + $0x10] sm:$0xf]
          %v570 = vld [vmem:[#allocation5 + $0x14] sm:$0xf]
          %v571 = vld [vmem:[#allocation5 + $0x18] sm:$0xf]
          %v572 = vld [vmem:[#allocation5 + $0x1c] sm:$0xf]
          %v573 = vld [vmem:[#allocation5 + $0x20] sm:$0xf]
          %v574 = vld [vmem:[#allocation5 + $0x24] sm:$0xf]
          %v575 = vld [vmem:[#allocation5 + $0x28] sm:$0xf]
          %v576 = vld [vmem:[#allocation5 + $0x2c] sm:$0xf]
          %v577 = vld [vmem:[#allocation5 + $0x30] sm:$0xf]
          %v578 = vld [vmem:[#allocation5 + $0x34] sm:$0xf]
          %v579 = vld [vmem:[#allocation5 + $0x38] sm:$0xf]
          %v580 = vld [vmem:[#allocation5 + $0x3c] sm:$0xf]
          %v581 = vld [vmem:[%s5] sm:$0x1]
          %v583 = vlaneseq
          %v584 = vshrl.u32 %v583, 7
          %v585 = vsub.s32 0, %v584
          %v586 = vrot.slane %v581, %v585
          %v604 = vunpack.c.l.b16 %v565
          %v605 = vunpack.c.l.b16 %v566
          %v606 = vunpack.c.l.b16 %v567
          %v607 = vunpack.c.l.b16 %v568
          %v608 = vunpack.c.l.b16 %v569
          %v609 = vunpack.c.l.b16 %v570
          %v610 = vunpack.c.l.b16 %v571
          %v611 = vunpack.c.l.b16 %v572
          %v612 = vunpack.c.l.b16 %v573
          %v613 = vunpack.c.l.b16 %v574
          %v614 = vunpack.c.l.b16 %v575
          %v615 = vunpack.c.l.b16 %v576
          %v616 = vunpack.c.l.b16 %v577
          %v617 = vunpack.c.l.b16 %v578
          %v618 = vunpack.c.l.b16 %v579
          %v619 = vunpack.c.l.b16 %v580
          %v620 = vpack.c.b16 %v605, %v604
          %v621 = vpack.c.b16 %v607, %v606
          %v622 = vpack.c.b16 %v609, %v608
          %v623 = vpack.c.b16 %v611, %v610
          %v624 = vpack.c.b16 %v613, %v612
          %v625 = vpack.c.b16 %v615, %v614
          %v626 = vpack.c.b16 %v617, %v616
          %v627 = vpack.c.b16 %v619, %v618
          %636 = vmatprep.subr.bf16.mxu0 0
          %637 = vmatpush1.bf16.msra.mxu0 %v620
          %638 = vmatprep.subr.bf16.mxu0 0
          %639 = vmatpush1.bf16.msra.mxu0 %v621
          %640 = vmatprep.subr.bf16.mxu0 0
          %641 = vmatpush1.bf16.msra.mxu0 %v622
          %642 = vmatprep.subr.bf16.mxu0 0
          %643 = vmatpush1.bf16.msra.mxu0 %v623
          %644 = vmatprep.subr.bf16.mxu0 0
          %645 = vmatpush1.bf16.msra.mxu0 %v624
          %646 = vmatprep.subr.bf16.mxu0 0
          %647 = vmatpush1.bf16.msra.mxu0 %v625
          %648 = vmatprep.subr.bf16.mxu0 0
          %649 = vmatpush1.bf16.msra.mxu0 %v626
          %650 = vmatprep.subr.bf16.mxu0 0
          %651 = vmatpush1.bf16.msra.mxu0 %v627
          %652 = vmatprep.subr.bf16.mxu0 0
          %653 = vmatpush1.bf16.msra.mxu0 0
          %654 = vmatprep.subr.bf16.mxu0 0
          %655 = vmatpush1.bf16.msra.mxu0 0
          %656 = vmatprep.subr.bf16.mxu0 0
          %657 = vmatpush1.bf16.msra.mxu0 0
          %658 = vmatprep.subr.bf16.mxu0 0
          %659 = vmatpush1.bf16.msra.mxu0 0
          %660 = vmatprep.subr.bf16.mxu0 0
          %661 = vmatpush1.bf16.msra.mxu0 0
          %662 = vmatprep.subr.bf16.mxu0 0
          %663 = vmatpush1.bf16.msra.mxu0 0
          %664 = vmatprep.subr.bf16.mxu0 0
          %665 = vmatpush1.bf16.msra.mxu0 0
          %666 = vmatprep.subr.bf16.mxu0 0
          %667 = vmatpush1.bf16.msra.mxu0 0
          %668 = vmatprep.mubr.bf16.mxu0 0
          %669 = vmatmul.mubr.bf16.gmra.mrb[0].mxu0 %v564
          %v670 = vpop.f32.mrb[0].mxu0
          %v671 = vadd.f32 %v586, %v670
          %v672 = vpop.f32.mrb[0].mxu0
          %v673 = vpop.f32.mrb[0].mxu0
          %v674 = vadd.f32 %v586, %v673
          %v675 = vpop.f32.mrb[0].mxu0
          %676 = vdwg.mxu0
          %v677 = vmax.f32 %v671, 0.0
          %v678 = vmax.f32 %v674, 0.0
          %679 = vst [vmem:[#allocation2] sm:$0xff] %v677
          %680 = vst [vmem:[#allocation2 + $0x8] sm:$0xff] %v678
        $region64: #{_dynamic_net_impl.1} parent=47 // pred_fallthru
          _
        %p681 = scmp.gt.s32.totalorder %s315, 2
        // Predicated region
        $region65: #{_dynamic_net_impl.1} parent=47 // pred_check
          %p682 = pneg %p681
        $region66: #{_dynamic_net_impl.1} parent=47 // pred_check_branch
          %684 = sbr.rel (%p682) target = $region68
        $region67: #{_dynamic_net_impl.1} parent=47 // pred_region
          %v685 = vld [vmem:[#allocation2] sm:$0xff]
          %v686 = vld [vmem:[#allocation2 + $0x8] sm:$0xff]
          %v687 = vpack.c.bf16 %v686, %v685
          %v688 = vld [vmem:[#allocation5] sm:$0xf]
          %v689 = vld [vmem:[#allocation5 + $0x4] sm:$0xf]
          %v690 = vld [vmem:[#allocation5 + $0x8] sm:$0xf]
          %v691 = vld [vmem:[#allocation5 + $0xc] sm:$0xf]
          %v692 = vld [vmem:[#allocation5 + $0x10] sm:$0xf]
          %v693 = vld [vmem:[#allocation5 + $0x14] sm:$0xf]
          %v694 = vld [vmem:[#allocation5 + $0x18] sm:$0xf]
          %v695 = vld [vmem:[#allocation5 + $0x1c] sm:$0xf]
          %v696 = vld [vmem:[#allocation5 + $0x20] sm:$0xf]
          %v697 = vld [vmem:[#allocation5 + $0x24] sm:$0xf]
          %v698 = vld [vmem:[#allocation5 + $0x28] sm:$0xf]
          %v699 = vld [vmem:[#allocation5 + $0x2c] sm:$0xf]
          %v700 = vld [vmem:[#allocation5 + $0x30] sm:$0xf]
          %v701 = vld [vmem:[#allocation5 + $0x34] sm:$0xf]
          %v702 = vld [vmem:[#allocation5 + $0x38] sm:$0xf]
          %v703 = vld [vmem:[#allocation5 + $0x3c] sm:$0xf]
          %v704 = vld [vmem:[%s5] sm:$0x1]
          %v706 = vlaneseq
          %v707 = vshrl.u32 %v706, 7
          %v708 = vsub.s32 0, %v707
          %v709 = vrot.slane %v704, %v708
          %v727 = vunpack.c.l.b16 %v688
          %v728 = vunpack.c.l.b16 %v689
          %v729 = vunpack.c.l.b16 %v690
          %v730 = vunpack.c.l.b16 %v691
          %v731 = vunpack.c.l.b16 %v692
          %v732 = vunpack.c.l.b16 %v693
          %v733 = vunpack.c.l.b16 %v694
          %v734 = vunpack.c.l.b16 %v695
          %v735 = vunpack.c.l.b16 %v696
          %v736 = vunpack.c.l.b16 %v697
          %v737 = vunpack.c.l.b16 %v698
          %v738 = vunpack.c.l.b16 %v699
          %v739 = vunpack.c.l.b16 %v700
          %v740 = vunpack.c.l.b16 %v701
          %v741 = vunpack.c.l.b16 %v702
          %v742 = vunpack.c.l.b16 %v703
          %v743 = vpack.c.b16 %v728, %v727
          %v744 = vpack.c.b16 %v730, %v729
          %v745 = vpack.c.b16 %v732, %v731
          %v746 = vpack.c.b16 %v734, %v733
          %v747 = vpack.c.b16 %v736, %v735
          %v748 = vpack.c.b16 %v738, %v737
          %v749 = vpack.c.b16 %v740, %v739
          %v750 = vpack.c.b16 %v742, %v741
          %759 = vmatprep.subr.bf16.mxu0 0
          %760 = vmatpush1.bf16.msra.mxu0 %v743
          %761 = vmatprep.subr.bf16.mxu0 0
          %762 = vmatpush1.bf16.msra.mxu0 %v744
          %763 = vmatprep.subr.bf16.mxu0 0
          %764 = vmatpush1.bf16.msra.mxu0 %v745
          %765 = vmatprep.subr.bf16.mxu0 0
          %766 = vmatpush1.bf16.msra.mxu0 %v746
          %767 = vmatprep.subr.bf16.mxu0 0
          %768 = vmatpush1.bf16.msra.mxu0 %v747
          %769 = vmatprep.subr.bf16.mxu0 0
          %770 = vmatpush1.bf16.msra.mxu0 %v748
          %771 = vmatprep.subr.bf16.mxu0 0
          %772 = vmatpush1.bf16.msra.mxu0 %v749
          %773 = vmatprep.subr.bf16.mxu0 0
          %774 = vmatpush1.bf16.msra.mxu0 %v750
          %775 = vmatprep.subr.bf16.mxu0 0
          %776 = vmatpush1.bf16.msra.mxu0 0
          %777 = vmatprep.subr.bf16.mxu0 0
          %778 = vmatpush1.bf16.msra.mxu0 0
          %779 = vmatprep.subr.bf16.mxu0 0
          %780 = vmatpush1.bf16.msra.mxu0 0
          %781 = vmatprep.subr.bf16.mxu0 0
          %782 = vmatpush1.bf16.msra.mxu0 0
          %783 = vmatprep.subr.bf16.mxu0 0
          %784 = vmatpush1.bf16.msra.mxu0 0
          %785 = vmatprep.subr.bf16.mxu0 0
          %786 = vmatpush1.bf16.msra.mxu0 0
          %787 = vmatprep.subr.bf16.mxu0 0
          %788 = vmatpush1.bf16.msra.mxu0 0
          %789 = vmatprep.subr.bf16.mxu0 0
          %790 = vmatpush1.bf16.msra.mxu0 0
          %791 = vmatprep.mubr.bf16.mxu0 0
          %792 = vmatmul.mubr.bf16.gmra.mrb[0].mxu0 %v687
          %v793 = vpop.f32.mrb[0].mxu0
          %v794 = vadd.f32 %v709, %v793
          %v795 = vpop.f32.mrb[0].mxu0
          %v796 = vpop.f32.mrb[0].mxu0
          %v797 = vadd.f32 %v709, %v796
          %v798 = vpop.f32.mrb[0].mxu0
          %799 = vdwg.mxu0
          %v800 = vmax.f32 %v794, 0.0
          %v801 = vmax.f32 %v797, 0.0
          %802 = vst [vmem:[#allocation2] sm:$0xff] %v800
          %803 = vst [vmem:[#allocation2 + $0x8] sm:$0xff] %v801
        $region68: #{_dynamic_net_impl.1} parent=47 // pred_fallthru
          _
        %v804 = vld [vmem:[#allocation2] sm:$0xff]
        %v805 = vld [vmem:[#allocation2 + $0x8] sm:$0xff]
        %v806 = vpack.c.bf16 %v805, %v804
        %v807 = vld [vmem:[#allocation7] sm:$0xf]
        %v808 = vld [vmem:[#allocation7 + $0x4] sm:$0xf]
        %v809 = vld [vmem:[#allocation7 + $0x8] sm:$0xf]
        %v810 = vld [vmem:[#allocation7 + $0xc] sm:$0xf]
        %v811 = vld [vmem:[#allocation7 + $0x10] sm:$0xf]
        %v812 = vld [vmem:[#allocation7 + $0x14] sm:$0xf]
        %v813 = vld [vmem:[#allocation7 + $0x18] sm:$0xf]
        %v814 = vld [vmem:[#allocation7 + $0x1c] sm:$0xf]
        %v815 = vld [vmem:[#allocation7 + $0x20] sm:$0xf]
        %v816 = vld [vmem:[#allocation7 + $0x24] sm:$0xf]
        %v817 = vld [vmem:[#allocation7 + $0x28] sm:$0xf]
        %v818 = vld [vmem:[#allocation7 + $0x2c] sm:$0xf]
        %v819 = vld [vmem:[#allocation7 + $0x30] sm:$0xf]
        %v820 = vld [vmem:[#allocation7 + $0x34] sm:$0xf]
        %v821 = vld [vmem:[#allocation7 + $0x38] sm:$0xf]
        %v822 = vld [vmem:[#allocation7 + $0x3c] sm:$0xf]
        %v823 = vld [vmem:[%s7] sm:$0x1]
        %v825 = vlaneseq
        %v826 = vshrl.u32 %v825, 7
        %v827 = vsub.s32 0, %v826
        %v828 = vrot.slane %v823, %v827
        %v846 = vunpack.c.l.b16 %v807
        %v847 = vunpack.c.l.b16 %v808
        %v848 = vunpack.c.l.b16 %v809
        %v849 = vunpack.c.l.b16 %v810
        %v850 = vunpack.c.l.b16 %v811
        %v851 = vunpack.c.l.b16 %v812
        %v852 = vunpack.c.l.b16 %v813
        %v853 = vunpack.c.l.b16 %v814
        %v854 = vunpack.c.l.b16 %v815
        %v855 = vunpack.c.l.b16 %v816
        %v856 = vunpack.c.l.b16 %v817
        %v857 = vunpack.c.l.b16 %v818
        %v858 = vunpack.c.l.b16 %v819
        %v859 = vunpack.c.l.b16 %v820
        %v860 = vunpack.c.l.b16 %v821
        %v861 = vunpack.c.l.b16 %v822
        %v862 = vpack.c.b16 %v847, %v846
        %v863 = vpack.c.b16 %v849, %v848
        %v864 = vpack.c.b16 %v851, %v850
        %v865 = vpack.c.b16 %v853, %v852
        %v866 = vpack.c.b16 %v855, %v854
        %v867 = vpack.c.b16 %v857, %v856
        %v868 = vpack.c.b16 %v859, %v858
        %v869 = vpack.c.b16 %v861, %v860
        %878 = vmatprep.subr.bf16.mxu0 0
        %879 = vmatpush1.bf16.msra.mxu0 %v862
        %880 = vmatprep.subr.bf16.mxu0 0
        %881 = vmatpush1.bf16.msra.mxu0 %v863
        %882 = vmatprep.subr.bf16.mxu0 0
        %883 = vmatpush1.bf16.msra.mxu0 %v864
        %884 = vmatprep.subr.bf16.mxu0 0
        %885 = vmatpush1.bf16.msra.mxu0 %v865
        %886 = vmatprep.subr.bf16.mxu0 0
        %887 = vmatpush1.bf16.msra.mxu0 %v866
        %888 = vmatprep.subr.bf16.mxu0 0
        %889 = vmatpush1.bf16.msra.mxu0 %v867
        %890 = vmatprep.subr.bf16.mxu0 0
        %891 = vmatpush1.bf16.msra.mxu0 %v868
        %892 = vmatprep.subr.bf16.mxu0 0
        %893 = vmatpush1.bf16.msra.mxu0 %v869
        %894 = vmatprep.subr.bf16.mxu0 0
        %895 = vmatpush1.bf16.msra.mxu0 0
        %896 = vmatprep.subr.bf16.mxu0 0
        %897 = vmatpush1.bf16.msra.mxu0 0
        %898 = vmatprep.subr.bf16.mxu0 0
        %899 = vmatpush1.bf16.msra.mxu0 0
        %900 = vmatprep.subr.bf16.mxu0 0
        %901 = vmatpush1.bf16.msra.mxu0 0
        %902 = vmatprep.subr.bf16.mxu0 0
        %903 = vmatpush1.bf16.msra.mxu0 0
        %904 = vmatprep.subr.bf16.mxu0 0
        %905 = vmatpush1.bf16.msra.mxu0 0
        %906 = vmatprep.subr.bf16.mxu0 0
        %907 = vmatpush1.bf16.msra.mxu0 0
        %908 = vmatprep.subr.bf16.mxu0 0
        %909 = vmatpush1.bf16.msra.mxu0 0
        %910 = vmatprep.mubr.bf16.mxu0 0
        %911 = vmatmul.mubr.bf16.gmra.mrb[0].mxu0 %v806
        %v912 = vpop.f32.mrb[0].mxu0
        %v913 = vadd.f32 %v828, %v912
        %v914 = vpop.f32.mrb[0].mxu0
        %v915 = vpop.f32.mrb[0].mxu0
        %v916 = vadd.f32 %v828, %v915
        %v917 = vpop.f32.mrb[0].mxu0
        %918 = vdwg.mxu0
        %919 = vst [vmem:[%s312] sm:$0xff] %v913
        %920 = vst [vmem:[%s312 + $0x8] sm:$0xff] %v916
        %s921 = smul.u32 2, %s22
        %p922 = scmp.lt.s32.totalorder %s921, 3
        %s923 = scalar_select %p922, %s921, 3
        %s924 = smul.addr %s923, 8
        %s925 = scalar_lea.vmem %s8, %s924
        // Predicated region
        $region69: #{_dynamic_net_impl.1} parent=47 // pred_check
          %p926 = pneg %p192
        $region70: #{_dynamic_net_impl.1} parent=47 // pred_check_branch
          %928 = sbr.rel (%p926) target = $region72
        $region71: #{_dynamic_net_impl.1} parent=47 // pred_region
          %s929 = smul.u32 2, %s22
        $region72: #{_dynamic_net_impl.1} parent=47 // pred_fallthru
          _
      $region48: #{_dynamic_net_impl.1} parent=5 // pred_fallthru
        _
      %p930 = scmp.le.s32.totalorder 2, %s17
      // Predicated region
      $region73: #{_dynamic_net_impl.1} parent=5 // pred_check
        %p931 = pneg %p930
      $region74: #{_dynamic_net_impl.1} parent=5 // pred_check_branch
        %933 = sbr.rel (%p931) target = $region76
      $region75: #{_dynamic_net_impl.1} parent=5 // pred_region
        %s934 = ssub.s32 %s17, 2
        // Predicated region
        $region77: #{_dynamic_net_impl.1} parent=75 // pred_check
          %p935 = pneg %p198
        $region78: #{_dynamic_net_impl.1} parent=75 // pred_check_branch
          %937 = sbr.rel (%p935) target = $region80
        $region79: #{_dynamic_net_impl.1} parent=75 // pred_region
          %s938 = smul.u32 2, %s23
          %p939 = scmp.lt.s32.totalorder %s938, 3
          %s940 = scalar_select %p939, %s938, 3
          %s941 = smul.addr %s940, 8
          %s942 = scalar_lea.vmem %s8, %s941
        $region80: #{_dynamic_net_impl.1} parent=75 // pred_fallthru
          _
      $region76: #{_dynamic_net_impl.1} parent=5 // pred_fallthru
        _
    $region6: #{_dynamic_net_impl.1} parent=1 // loop_footer
      %s21 = sadd.s32 1, %s17
    $region7: #{_dynamic_net_impl.1} parent=1 // loop_footer_branch
      %16 = sbr.rel target = $region3
    $region8: #{_dynamic_net_impl.1} parent=1 // loop_exit
      _
    %943 = vsyncpa [#allocation6], 1
    %s944 = scalar_lea.sflag [#allocation6], 1
    %945 = vsyncpa %s944, 1
    %946 = vsyncpa [#allocation8], 1

</llo_original>
